<compile_context>
chip_gen: v6e
topology: v6e:2x2x1
jax: 0.10.0
libtpu: 0.0.40
codegen_flags: <defaults>
</compile_context>

<pallas_src>
import math
import jax
import jax.numpy as jnp
from jax import lax
from jax.experimental import pallas as pl
from jax.experimental.pallas import tpu as pltpu

# ---------------- configuration (small, consistent with the module) ----------------
B, S, D = 2, 8, 32          # batch, seq, model size
H = 4                       # attention heads
DK = D // H                 # per-head dim
DFF = 64                    # feed-forward hidden dim
BS = B * S                  # flattened query rows
W = B * H * S               # "wide" key axis: batch-major, then head, then key pos
EPS = 1e-6
NEG_INF = -1e9


def _layer_norm(v, a, b):
    # torch: mean over last dim, unbiased std (N-1), divide by (std + eps)
    d = v.shape[-1]
    mean = jnp.mean(v, axis=-1, keepdims=True)
    var = jnp.sum((v - mean) ** 2, axis=-1, keepdims=True) * (1.0 / (d - 1))
    inv = pl.reciprocal(jnp.sqrt(var) + EPS, approx=False)   # approx=True risks 1e-4 tol
    return a * (v - mean) * inv + b


def encoder_layer_kernel(x_ref, bias_ref, sel_ref, hmask_ref, gmat_ref,
                         ln1_a_ref, ln1_b_ref,
                         wqkv_ref, bqkv_ref, wo_ref, bo_ref,
                         ln2_a_ref, ln2_b_ref,
                         w1_ref, b1_ref, w2_ref, b2_ref,
                         o_ref):
    x = x_ref[...]                                 # (B*S, D) — whole batch, one step

    # ------------- sublayer 0: x + self_attn(LN(x), LN(x), LN(x), mask) -------------
    xn = _layer_norm(x, ln1_a_ref[...], ln1_b_ref[...])

    # Fused QKV projection; 1/sqrt(dk) is already folded into the Wq/bq columns.
    qkv = jnp.dot(xn, wqkv_ref[...], preferred_element_type=jnp.float32) + bqkv_ref[...]
    q = qkv[:, 0 * D:1 * D]                        # (BS, D)  lane slices land on the XLU
    k = qkv[:, 1 * D:2 * D]
    v = qkv[:, 2 * D:3 * D]

    # Wide block-diagonal K/V over (batch, head):
    #   wide row j = b*H*S + h*S + s holds key s of batch b, zeroed outside head h's
    #   channels.  Built with a selector matmul (MXU, free here) + one VPU multiply,
    #   instead of sublane concatenates (VMEM copy traffic).
    hmask = hmask_ref[...]                         # (W, D)  0/1 per-channel head mask
    sel = sel_ref[...]                             # (W, BS) 0/1 row selector
    k_wide = jnp.dot(sel, k, preferred_element_type=jnp.float32) * hmask   # (W, D)
    v_wide = jnp.dot(sel, v, preferred_element_type=jnp.float32) * hmask   # (W, D)

    # All batches' and heads' scores in one matmul: sc[r, j] = <q_h(j)[r], k_h(j)[s(j)]>
    sc = jnp.einsum("rd,jd->rj", q, k_wide,
                    preferred_element_type=jnp.float32)                    # (BS, W)
    # Additive bias: -1e9 on masked keys AND wrong-batch columns (precomputed).
    sc = sc + bias_ref[...]

    # Per-(batch, head) softmax.  Subtracting the global per-row max is exact for each
    # head's softmax; -1e9 entries underflow exactly to 0.  gmat groups by HEAD only
    # (spanning both batches): wrong-batch probabilities are exactly 0, so they add
    # nothing to the denominator and the 0/denom ratio for those columns is exactly 0
    # (no 0/0).  NOTE: if a (batch,head) row ever had ALL of its own keys masked the
    # denominator would be 0; impossible with the head-independent (B,1,S) mask used here.
    m = jnp.max(sc, axis=-1, keepdims=True)
    p = jnp.exp(sc - m)
    denom = jnp.dot(p, gmat_ref[...], preferred_element_type=jnp.float32)  # (BS, W)
    pn = p * pl.reciprocal(denom, approx=False)

    # Concatenated multi-head output for all batches in one matmul, then Wo.
    attn = jnp.dot(pn, v_wide, preferred_element_type=jnp.float32)         # (BS, D)
    attn = jnp.dot(attn, wo_ref[...], preferred_element_type=jnp.float32) + bo_ref[...]

    # dropout is identity in eval mode
    x1 = x + attn

    # ------------------- sublayer 1: x + feed_forward(LN(x)) -------------------
    xn2 = _layer_norm(x1, ln2_a_ref[...], ln2_b_ref[...])
    h1 = jnp.maximum(
        jnp.dot(xn2, w1_ref[...], preferred_element_type=jnp.float32) + b1_ref[...], 0.0)
    ff = jnp.dot(h1, w2_ref[...], preferred_element_type=jnp.float32) + b2_ref[...]

    o_ref[...] = x1 + ff


def encoder_layer(x, mask, params):
    # Wrapper-side layout plumbing and constant folding (free XLA ops, not kernel work).
    (ln1_a, ln1_b, wq, bq, wk, bk, wv, bv, wo, bo,
     ln2_a, ln2_b, w1, b1, w2, b2) = params

    x_flat = x.reshape(BS, D)

    # Fused QKV weights, with 1/sqrt(dk) folded into the Q columns.
    sq = 1.0 / math.sqrt(DK)
    wqkv = jnp.concatenate([wq * sq, wk, wv], axis=1)          # (D, 3D)
    bqkv = jnp.concatenate([bq * sq, bk, bv], axis=1)          # (1, 3D)

    # Wide-axis bookkeeping: j = b*H*S + h*S + s.
    j = jnp.arange(W)
    b_j = j // (H * S)
    h_j = (j // S) % H
    s_j = j % S

    # Row selector: sel[j, i] = 1 iff flat row i == b_j*S + s_j.
    sel = (jnp.arange(BS)[None, :] == (b_j * S + s_j)[:, None]).astype(jnp.float32)
    # Per-channel head mask: head_mask[j, c] = 1 iff channel c belongs to head h_j.
    head_mask = ((jnp.arange(D)[None, :] // DK) == h_j[:, None]).astype(jnp.float32)
    # Softmax group matrix: same head (across batches — see kernel comment).
    gmat = (h_j[:, None] == h_j[None, :]).astype(jnp.float32)  # (W, W)

    # Additive score bias: 0 where (same batch AND key unmasked), else -1e9.
    b_r = jnp.arange(BS) // S
    key_keep = mask[b_j, 0, s_j] != 0.0                        # (W,)
    keep = (b_r[:, None] == b_j[None, :]) & key_keep[None, :]  # (BS, W)
    bias = jnp.where(keep, 0.0, NEG_INF).astype(jnp.float32)

    full = lambda shape: pl.BlockSpec(shape, lambda i: (0,) * len(shape))

    out_flat = pl.pallas_call(
        encoder_layer_kernel,
        out_shape=jax.ShapeDtypeStruct((BS, D), jnp.float32),
        grid_spec=pltpu.PrefetchScalarGridSpec(
            num_scalar_prefetch=0,
            grid=(1,),                              # single step: whole problem fits in VMEM
            in_specs=[
                full((BS, D)),                      # x (flattened)
                full((BS, W)),                      # additive score bias
                full((W, BS)),                      # wide-row selector
                full((W, D)),                       # per-channel head mask
                full((W, W)),                       # softmax group matrix
                full((1, D)), full((1, D)),         # ln1 a/b
                full((D, 3 * D)), full((1, 3 * D)), # fused Wqkv, bqkv
                full((D, D)), full((1, D)),         # Wo, bo
                full((1, D)), full((1, D)),         # ln2 a/b
                full((D, DFF)), full((1, DFF)),     # W1, b1
                full((DFF, D)), full((1, D)),       # W2, b2
            ],
            out_specs=full((BS, D)),
        ),
        compiler_params=pltpu.CompilerParams(dimension_semantics=("arbitrary",)),
    )(x_flat, bias, sel, head_mask, gmat,
      ln1_a, ln1_b, wqkv, bqkv, wo, bo, ln2_a, ln2_b, w1, b1, w2, b2)
    return out_flat.reshape(B, S, D)


# ---------------- pure-JAX reference (mirrors the PyTorch forward) ----------------
def encoder_layer_ref(x, mask, params):
    (ln1_a, ln1_b, wq, bq, wk, bk, wv, bv, wo, bo,
     ln2_a, ln2_b, w1, b1, w2, b2) = params

    def ln(v, a, b):
        mean = jnp.mean(v, axis=-1, keepdims=True)
        var = jnp.sum((v - mean) ** 2, axis=-1, keepdims=True) / (v.shape[-1] - 1)
        return a * (v - mean) / (jnp.sqrt(var) + EPS) + b

    xn = ln(x, ln1_a, ln1_b)
    q = xn @ wq + bq
    k = xn @ wk + bk
    v = xn @ wv + bv
    q = q.reshape(B, S, H, DK).transpose(0, 2, 1, 3)
    k = k.reshape(B, S, H, DK).transpose(0, 2, 1, 3)
    v = v.reshape(B, S, H, DK).transpose(0, 2, 1, 3)
    sc = jnp.einsum("bhqd,bhkd->bhqk", q, k) / math.sqrt(DK)
    sc = jnp.where(mask[:, None, :, :] == 0, -1e9, sc)     # mask (B,1,S) -> (B,1,1,S)
    p = jax.nn.softmax(sc, axis=-1)
    a = jnp.einsum("bhqk,bhkd->bhqd", p, v).transpose(0, 2, 1, 3).reshape(B, S, D)
    a = a @ wo + bo
    x1 = x + a
    xn2 = ln(x1, ln2_a, ln2_b)
    ff = jnp.maximum(xn2 @ w1 + b1, 0.0) @ w2 + b2
    return x1 + ff


if __name__ == "__main__":
    key = jax.random.PRNGKey(0)
    keys = jax.random.split(key, 12)

    x = jax.random.normal(keys[0], (B, S, D), dtype=jnp.float32)
    mask = jnp.ones((B, 1, S), dtype=jnp.float32)
    mask = mask.at[1, 0, 6:].set(0.0)   # mask out the tail of the second sequence

    scale = 0.02
    params = (
        jnp.ones((1, D), jnp.float32),                                   # ln1 a_2
        jnp.zeros((1, D), jnp.float32),                                  # ln1 b_2
        scale * jax.random.normal(keys[1], (D, D), jnp.float32),         # Wq
        jnp.zeros((1, D), jnp.float32),
        scale * jax.random.normal(keys[2], (D, D), jnp.float32),         # Wk
        jnp.zeros((1, D), jnp.float32),
        scale * jax.random.normal(keys[3], (D, D), jnp.float32),         # Wv
        jnp.zeros((1, D), jnp.float32),
        scale * jax.random.normal(keys[4], (D, D), jnp.float32),         # Wo
        jnp.zeros((1, D), jnp.float32),
        jnp.ones((1, D), jnp.float32),                                   # ln2 a_2
        jnp.zeros((1, D), jnp.float32),                                  # ln2 b_2
        scale * jax.random.normal(keys[5], (D, DFF), jnp.float32),       # W1
        jnp.zeros((1, DFF), jnp.float32),
        scale * jax.random.normal(keys[6], (DFF, D), jnp.float32),       # W2
        jnp.zeros((1, D), jnp.float32),
    )

    out = encoder_layer(x, mask, params)
    out = jax.block_until_ready(out)

    ref = encoder_layer_ref(x, mask, params)
    assert out.shape == (B, S, D)
    assert jnp.allclose(out, ref, atol=1e-4, rtol=1e-4), "Pallas output mismatch vs reference"

    print("KERNEL_OK")
</pallas_src>

<mosaic_0001>
module attributes {stable_mosaic.version = 11 : i64} {
  func.func @encoder_layer_kernel(%arg0: i32, %arg1: memref<16x32xf32, #tpu.memory_space<vmem>>, %arg2: memref<16x64xf32, #tpu.memory_space<vmem>>, %arg3: memref<64x16xf32, #tpu.memory_space<vmem>>, %arg4: memref<64x32xf32, #tpu.memory_space<vmem>>, %arg5: memref<64x64xf32, #tpu.memory_space<vmem>>, %arg6: memref<1x32xf32, #tpu.memory_space<vmem>>, %arg7: memref<1x32xf32, #tpu.memory_space<vmem>>, %arg8: memref<32x96xf32, #tpu.memory_space<vmem>>, %arg9: memref<1x96xf32, #tpu.memory_space<vmem>>, %arg10: memref<32x32xf32, #tpu.memory_space<vmem>>, %arg11: memref<1x32xf32, #tpu.memory_space<vmem>>, %arg12: memref<1x32xf32, #tpu.memory_space<vmem>>, %arg13: memref<1x32xf32, #tpu.memory_space<vmem>>, %arg14: memref<32x64xf32, #tpu.memory_space<vmem>>, %arg15: memref<1x64xf32, #tpu.memory_space<vmem>>, %arg16: memref<64x32xf32, #tpu.memory_space<vmem>>, %arg17: memref<1x32xf32, #tpu.memory_space<vmem>>, %arg18: memref<16x32xf32, #tpu.memory_space<vmem>>) attributes {dimension_semantics = [#tpu.dimension_semantics<arbitrary>], iteration_bounds = array<i64: 1>, scalar_prefetch = 0 : i64, scratch_operands = 0 : i64, tpu.core_type = #tpu.core_type<tc>, window_params = [{pipeline_mode = #tpu.pipeline_mode<synchronous>, transform_indices = @transform_0, window_bounds = array<i64: 16, 32>}, {pipeline_mode = #tpu.pipeline_mode<synchronous>, transform_indices = @transform_1, window_bounds = array<i64: 16, 64>}, {pipeline_mode = #tpu.pipeline_mode<synchronous>, transform_indices = @transform_2, window_bounds = array<i64: 64, 16>}, {pipeline_mode = #tpu.pipeline_mode<synchronous>, transform_indices = @transform_3, window_bounds = array<i64: 64, 32>}, {pipeline_mode = #tpu.pipeline_mode<synchronous>, transform_indices = @transform_4, window_bounds = array<i64: 64, 64>}, {pipeline_mode = #tpu.pipeline_mode<synchronous>, transform_indices = @transform_5, window_bounds = array<i64: 1, 32>}, {pipeline_mode = #tpu.pipeline_mode<synchronous>, transform_indices = @transform_6, window_bounds = array<i64: 1, 32>}, {pipeline_mode = #tpu.pipeline_mode<synchronous>, transform_indices = @transform_7, window_bounds = array<i64: 32, 96>}, {pipeline_mode = #tpu.pipeline_mode<synchronous>, transform_indices = @transform_8, window_bounds = array<i64: 1, 96>}, {pipeline_mode = #tpu.pipeline_mode<synchronous>, transform_indices = @transform_9, window_bounds = array<i64: 32, 32>}, {pipeline_mode = #tpu.pipeline_mode<synchronous>, transform_indices = @transform_10, window_bounds = array<i64: 1, 32>}, {pipeline_mode = #tpu.pipeline_mode<synchronous>, transform_indices = @transform_11, window_bounds = array<i64: 1, 32>}, {pipeline_mode = #tpu.pipeline_mode<synchronous>, transform_indices = @transform_12, window_bounds = array<i64: 1, 32>}, {pipeline_mode = #tpu.pipeline_mode<synchronous>, transform_indices = @transform_13, window_bounds = array<i64: 32, 64>}, {pipeline_mode = #tpu.pipeline_mode<synchronous>, transform_indices = @transform_14, window_bounds = array<i64: 1, 64>}, {pipeline_mode = #tpu.pipeline_mode<synchronous>, transform_indices = @transform_15, window_bounds = array<i64: 64, 32>}, {pipeline_mode = #tpu.pipeline_mode<synchronous>, transform_indices = @transform_16, window_bounds = array<i64: 1, 32>}, {pipeline_mode = #tpu.pipeline_mode<synchronous>, transform_indices = @transform_17, window_bounds = array<i64: 16, 32>}]} {
    %c0 = arith.constant 0 : index
    %c0_0 = arith.constant 0 : index
    %0 = vector.load %arg1[%c0, %c0_0] : memref<16x32xf32, #tpu.memory_space<vmem>>, vector<16x32xf32>
    %c0_1 = arith.constant 0 : index
    %c0_2 = arith.constant 0 : index
    %1 = vector.load %arg6[%c0_1, %c0_2] : memref<1x32xf32, #tpu.memory_space<vmem>>, vector<1x32xf32>
    %c0_3 = arith.constant 0 : index
    %c0_4 = arith.constant 0 : index
    %2 = vector.load %arg7[%c0_3, %c0_4] : memref<1x32xf32, #tpu.memory_space<vmem>>, vector<1x32xf32>
    %cst = arith.constant dense<0.000000e+00> : vector<16xf32>
    %3 = vector.multi_reduction <add>, %0, %cst [1] : vector<16x32xf32> to vector<16xf32>
    %4 = vector.shape_cast %3 : vector<16xf32> to vector<16x1xf32>
    %cst_5 = arith.constant 3.200000e+01 : f32
    %5 = vector.broadcast %cst_5 : f32 to vector<16x1xf32>
    %6 = arith.divf %4, %5 : vector<16x1xf32>
    %7 = vector.broadcast %6 : vector<16x1xf32> to vector<16x32xf32>
    %8 = arith.subf %0, %7 : vector<16x32xf32>
    %9 = arith.mulf %8, %8 : vector<16x32xf32>
    %cst_6 = arith.constant dense<0.000000e+00> : vector<16xf32>
    %10 = vector.multi_reduction <add>, %9, %cst_6 [1] : vector<16x32xf32> to vector<16xf32>
    %11 = vector.shape_cast %10 : vector<16xf32> to vector<16x1xf32>
    %cst_7 = arith.constant 0.0322580636 : f32
    %12 = vector.broadcast %cst_7 : f32 to vector<16x1xf32>
    %13 = arith.mulf %11, %12 : vector<16x1xf32>
    %14 = math.sqrt %13 : vector<16x1xf32>
    %cst_8 = arith.constant 9.99999997E-7 : f32
    %15 = vector.broadcast %cst_8 : f32 to vector<16x1xf32>
    %16 = arith.addf %14, %15 : vector<16x1xf32>
    %17 = tpu.reciprocal %16 : vector<16x1xf32> -> vector<16x1xf32>
    %18 = vector.broadcast %6 : vector<16x1xf32> to vector<16x32xf32>
    %19 = arith.subf %0, %18 : vector<16x32xf32>
    %20 = vector.broadcast %1 : vector<1x32xf32> to vector<16x32xf32>
    %21 = arith.mulf %20, %19 : vector<16x32xf32>
    %22 = vector.broadcast %17 : vector<16x1xf32> to vector<16x32xf32>
    %23 = arith.mulf %21, %22 : vector<16x32xf32>
    %24 = vector.broadcast %2 : vector<1x32xf32> to vector<16x32xf32>
    %25 = arith.addf %23, %24 : vector<16x32xf32>
    %c0_9 = arith.constant 0 : index
    %c0_10 = arith.constant 0 : index
    %26 = vector.load %arg8[%c0_9, %c0_10] : memref<32x96xf32, #tpu.memory_space<vmem>>, vector<32x96xf32>
    %cst_11 = arith.constant dense<0.000000e+00> : vector<16x96xf32>
    %27 = tpu.matmul %25, %26, %cst_11 {dimension_numbers = #tpu.dot_dimension_numbers<[1], [0], [0], [1], [0, 0, 1, 1], [], []>} : vector<16x32xf32>, vector<32x96xf32>, vector<16x96xf32> -> vector<16x96xf32>
    %c0_12 = arith.constant 0 : index
    %c0_13 = arith.constant 0 : index
    %28 = vector.load %arg9[%c0_12, %c0_13] : memref<1x96xf32, #tpu.memory_space<vmem>>, vector<1x96xf32>
    %29 = vector.broadcast %28 : vector<1x96xf32> to vector<16x96xf32>
    %30 = arith.addf %27, %29 : vector<16x96xf32>
    %31 = vector.extract_strided_slice %30 {offsets = [0, 0], sizes = [16, 32], strides = [1, 1]} : vector<16x96xf32> to vector<16x32xf32>
    %32 = vector.extract_strided_slice %30 {offsets = [0, 32], sizes = [16, 32], strides = [1, 1]} : vector<16x96xf32> to vector<16x32xf32>
    %33 = vector.extract_strided_slice %30 {offsets = [0, 64], sizes = [16, 32], strides = [1, 1]} : vector<16x96xf32> to vector<16x32xf32>
    %c0_14 = arith.constant 0 : index
    %c0_15 = arith.constant 0 : index
    %34 = vector.load %arg4[%c0_14, %c0_15] : memref<64x32xf32, #tpu.memory_space<vmem>>, vector<64x32xf32>
    %c0_16 = arith.constant 0 : index
    %c0_17 = arith.constant 0 : index
    %35 = vector.load %arg3[%c0_16, %c0_17] : memref<64x16xf32, #tpu.memory_space<vmem>>, vector<64x16xf32>
    %cst_18 = arith.constant dense<0.000000e+00> : vector<64x32xf32>
    %36 = tpu.matmul %35, %32, %cst_18 {dimension_numbers = #tpu.dot_dimension_numbers<[1], [0], [0], [1], [0, 0, 1, 1], [], []>} : vector<64x16xf32>, vector<16x32xf32>, vector<64x32xf32> -> vector<64x32xf32>
    %37 = arith.mulf %36, %34 : vector<64x32xf32>
    %cst_19 = arith.constant dense<0.000000e+00> : vector<64x32xf32>
    %38 = tpu.matmul %35, %33, %cst_19 {dimension_numbers = #tpu.dot_dimension_numbers<[1], [0], [0], [1], [0, 0, 1, 1], [], []>} : vector<64x16xf32>, vector<16x32xf32>, vector<64x32xf32> -> vector<64x32xf32>
    %39 = arith.mulf %38, %34 : vector<64x32xf32>
    "tpu.trace_start"() <{level = 10 : i32, message = "rd,jd->rj"}> : () -> ()
    %cst_20 = arith.constant dense<0.000000e+00> : vector<16x64xf32>
    %40 = tpu.matmul %31, %37, %cst_20 {dimension_numbers = #tpu.dot_dimension_numbers<[1], [1], [0], [0], [0, 0, 1, 0], [], []>} : vector<16x32xf32>, vector<64x32xf32>, vector<16x64xf32> -> vector<16x64xf32>
    "tpu.trace_stop"() : () -> ()
    %c0_21 = arith.constant 0 : index
    %c0_22 = arith.constant 0 : index
    %41 = vector.load %arg2[%c0_21, %c0_22] : memref<16x64xf32, #tpu.memory_space<vmem>>, vector<16x64xf32>
    %42 = arith.addf %40, %41 : vector<16x64xf32>
    %cst_23 = arith.constant dense<0xFF800000> : vector<16xf32>
    %43 = vector.multi_reduction <maximumf>, %42, %cst_23 [1] : vector<16x64xf32> to vector<16xf32>
    %44 = vector.shape_cast %43 : vector<16xf32> to vector<16x1xf32>
    %45 = vector.broadcast %44 : vector<16x1xf32> to vector<16x64xf32>
    %46 = arith.subf %42, %45 : vector<16x64xf32>
    %47 = math.exp %46 : vector<16x64xf32>
    %c0_24 = arith.constant 0 : index
    %c0_25 = arith.constant 0 : index
    %48 = vector.load %arg5[%c0_24, %c0_25] : memref<64x64xf32, #tpu.memory_space<vmem>>, vector<64x64xf32>
    %cst_26 = arith.constant dense<0.000000e+00> : vector<16x64xf32>
    %49 = tpu.matmul %47, %48, %cst_26 {dimension_numbers = #tpu.dot_dimension_numbers<[1], [0], [0], [1], [0, 0, 1, 1], [], []>} : vector<16x64xf32>, vector<64x64xf32>, vector<16x64xf32> -> vector<16x64xf32>
    %50 = tpu.reciprocal %49 : vector<16x64xf32> -> vector<16x64xf32>
    %51 = arith.mulf %47, %50 : vector<16x64xf32>
    %cst_27 = arith.constant dense<0.000000e+00> : vector<16x32xf32>
    %52 = tpu.matmul %51, %39, %cst_27 {dimension_numbers = #tpu.dot_dimension_numbers<[1], [0], [0], [1], [0, 0, 1, 1], [], []>} : vector<16x64xf32>, vector<64x32xf32>, vector<16x32xf32> -> vector<16x32xf32>
    %c0_28 = arith.constant 0 : index
    %c0_29 = arith.constant 0 : index
    %53 = vector.load %arg10[%c0_28, %c0_29] : memref<32x32xf32, #tpu.memory_space<vmem>>, vector<32x32xf32>
    %cst_30 = arith.constant dense<0.000000e+00> : vector<16x32xf32>
    %54 = tpu.matmul %52, %53, %cst_30 {dimension_numbers = #tpu.dot_dimension_numbers<[1], [0], [0], [1], [0, 0, 1, 1], [], []>} : vector<16x32xf32>, vector<32x32xf32>, vector<16x32xf32> -> vector<16x32xf32>
    %c0_31 = arith.constant 0 : index
    %c0_32 = arith.constant 0 : index
    %55 = vector.load %arg11[%c0_31, %c0_32] : memref<1x32xf32, #tpu.memory_space<vmem>>, vector<1x32xf32>
    %56 = vector.broadcast %55 : vector<1x32xf32> to vector<16x32xf32>
    %57 = arith.addf %54, %56 : vector<16x32xf32>
    %58 = arith.addf %0, %57 : vector<16x32xf32>
    %c0_33 = arith.constant 0 : index
    %c0_34 = arith.constant 0 : index
    %59 = vector.load %arg12[%c0_33, %c0_34] : memref<1x32xf32, #tpu.memory_space<vmem>>, vector<1x32xf32>
    %c0_35 = arith.constant 0 : index
    %c0_36 = arith.constant 0 : index
    %60 = vector.load %arg13[%c0_35, %c0_36] : memref<1x32xf32, #tpu.memory_space<vmem>>, vector<1x32xf32>
    %cst_37 = arith.constant dense<0.000000e+00> : vector<16xf32>
    %61 = vector.multi_reduction <add>, %58, %cst_37 [1] : vector<16x32xf32> to vector<16xf32>
    %62 = vector.shape_cast %61 : vector<16xf32> to vector<16x1xf32>
    %cst_38 = arith.constant 3.200000e+01 : f32
    %63 = vector.broadcast %cst_38 : f32 to vector<16x1xf32>
    %64 = arith.divf %62, %63 : vector<16x1xf32>
    %65 = vector.broadcast %64 : vector<16x1xf32> to vector<16x32xf32>
    %66 = arith.subf %58, %65 : vector<16x32xf32>
    %67 = arith.mulf %66, %66 : vector<16x32xf32>
    %cst_39 = arith.constant dense<0.000000e+00> : vector<16xf32>
    %68 = vector.multi_reduction <add>, %67, %cst_39 [1] : vector<16x32xf32> to vector<16xf32>
    %69 = vector.shape_cast %68 : vector<16xf32> to vector<16x1xf32>
    %cst_40 = arith.constant 0.0322580636 : f32
    %70 = vector.broadcast %cst_40 : f32 to vector<16x1xf32>
    %71 = arith.mulf %69, %70 : vector<16x1xf32>
    %72 = math.sqrt %71 : vector<16x1xf32>
    %cst_41 = arith.constant 9.99999997E-7 : f32
    %73 = vector.broadcast %cst_41 : f32 to vector<16x1xf32>
    %74 = arith.addf %72, %73 : vector<16x1xf32>
    %75 = tpu.reciprocal %74 : vector<16x1xf32> -> vector<16x1xf32>
    %76 = vector.broadcast %64 : vector<16x1xf32> to vector<16x32xf32>
    %77 = arith.subf %58, %76 : vector<16x32xf32>
    %78 = vector.broadcast %59 : vector<1x32xf32> to vector<16x32xf32>
    %79 = arith.mulf %78, %77 : vector<16x32xf32>
    %80 = vector.broadcast %75 : vector<16x1xf32> to vector<16x32xf32>
    %81 = arith.mulf %79, %80 : vector<16x32xf32>
    %82 = vector.broadcast %60 : vector<1x32xf32> to vector<16x32xf32>
    %83 = arith.addf %81, %82 : vector<16x32xf32>
    %c0_42 = arith.constant 0 : index
    %c0_43 = arith.constant 0 : index
    %84 = vector.load %arg14[%c0_42, %c0_43] : memref<32x64xf32, #tpu.memory_space<vmem>>, vector<32x64xf32>
    %cst_44 = arith.constant dense<0.000000e+00> : vector<16x64xf32>
    %85 = tpu.matmul %83, %84, %cst_44 {dimension_numbers = #tpu.dot_dimension_numbers<[1], [0], [0], [1], [0, 0, 1, 1], [], []>} : vector<16x32xf32>, vector<32x64xf32>, vector<16x64xf32> -> vector<16x64xf32>
    %c0_45 = arith.constant 0 : index
    %c0_46 = arith.constant 0 : index
    %86 = vector.load %arg15[%c0_45, %c0_46] : memref<1x64xf32, #tpu.memory_space<vmem>>, vector<1x64xf32>
    %87 = vector.broadcast %86 : vector<1x64xf32> to vector<16x64xf32>
    %88 = arith.addf %85, %87 : vector<16x64xf32>
    %cst_47 = arith.constant 0.000000e+00 : f32
    %89 = vector.broadcast %cst_47 : f32 to vector<16x64xf32>
    %90 = arith.maximumf %88, %89 : vector<16x64xf32>
    %c0_48 = arith.constant 0 : index
    %c0_49 = arith.constant 0 : index
    %91 = vector.load %arg16[%c0_48, %c0_49] : memref<64x32xf32, #tpu.memory_space<vmem>>, vector<64x32xf32>
    %cst_50 = arith.constant dense<0.000000e+00> : vector<16x32xf32>
    %92 = tpu.matmul %90, %91, %cst_50 {dimension_numbers = #tpu.dot_dimension_numbers<[1], [0], [0], [1], [0, 0, 1, 1], [], []>} : vector<16x64xf32>, vector<64x32xf32>, vector<16x32xf32> -> vector<16x32xf32>
    %c0_51 = arith.constant 0 : index
    %c0_52 = arith.constant 0 : index
    %93 = vector.load %arg17[%c0_51, %c0_52] : memref<1x32xf32, #tpu.memory_space<vmem>>, vector<1x32xf32>
    %94 = vector.broadcast %93 : vector<1x32xf32> to vector<16x32xf32>
    %95 = arith.addf %92, %94 : vector<16x32xf32>
    %96 = arith.addf %58, %95 : vector<16x32xf32>
    %c0_53 = arith.constant 0 : index
    %c0_54 = arith.constant 0 : index
    %97 = vector.load %arg18[%c0_53, %c0_54] : memref<16x32xf32, #tpu.memory_space<vmem>>, vector<16x32xf32>
    tpu.vector_store %arg18[%c0_53, %c0_54], %96 {strides = array<i32>} : memref<16x32xf32, #tpu.memory_space<vmem>>, vector<16x32xf32>,
    return
  }
  func.func @transform_0(%arg0: i32) -> (i32, i32) {
    %c0_i32 = arith.constant 0 : i32
    %c0_i32_0 = arith.constant 0 : i32
    %c0_i32_1 = arith.constant 0 : i32
    return %c0_i32, %c0_i32_0 : i32, i32
  }
  func.func @transform_1(%arg0: i32) -> (i32, i32) {
    %c0_i32 = arith.constant 0 : i32
    %c0_i32_0 = arith.constant 0 : i32
    %c0_i32_1 = arith.constant 0 : i32
    return %c0_i32, %c0_i32_0 : i32, i32
  }
  func.func @transform_2(%arg0: i32) -> (i32, i32) {
    %c0_i32 = arith.constant 0 : i32
    %c0_i32_0 = arith.constant 0 : i32
    %c0_i32_1 = arith.constant 0 : i32
    return %c0_i32, %c0_i32_0 : i32, i32
  }
  func.func @transform_3(%arg0: i32) -> (i32, i32) {
    %c0_i32 = arith.constant 0 : i32
    %c0_i32_0 = arith.constant 0 : i32
    %c0_i32_1 = arith.constant 0 : i32
    return %c0_i32, %c0_i32_0 : i32, i32
  }
  func.func @transform_4(%arg0: i32) -> (i32, i32) {
    %c0_i32 = arith.constant 0 : i32
    %c0_i32_0 = arith.constant 0 : i32
    %c0_i32_1 = arith.constant 0 : i32
    return %c0_i32, %c0_i32_0 : i32, i32
  }
  func.func @transform_5(%arg0: i32) -> (i32, i32) {
    %c0_i32 = arith.constant 0 : i32
    %c0_i32_0 = arith.constant 0 : i32
    %c0_i32_1 = arith.constant 0 : i32
    return %c0_i32, %c0_i32_0 : i32, i32
  }
  func.func @transform_6(%arg0: i32) -> (i32, i32) {
    %c0_i32 = arith.constant 0 : i32
    %c0_i32_0 = arith.constant 0 : i32
    %c0_i32_1 = arith.constant 0 : i32
    return %c0_i32, %c0_i32_0 : i32, i32
  }
  func.func @transform_7(%arg0: i32) -> (i32, i32) {
    %c0_i32 = arith.constant 0 : i32
    %c0_i32_0 = arith.constant 0 : i32
    %c0_i32_1 = arith.constant 0 : i32
    return %c0_i32, %c0_i32_0 : i32, i32
  }
  func.func @transform_8(%arg0: i32) -> (i32, i32) {
    %c0_i32 = arith.constant 0 : i32
    %c0_i32_0 = arith.constant 0 : i32
    %c0_i32_1 = arith.constant 0 : i32
    return %c0_i32, %c0_i32_0 : i32, i32
  }
  func.func @transform_9(%arg0: i32) -> (i32, i32) {
    %c0_i32 = arith.constant 0 : i32
    %c0_i32_0 = arith.constant 0 : i32
    %c0_i32_1 = arith.constant 0 : i32
    return %c0_i32, %c0_i32_0 : i32, i32
  }
  func.func @transform_10(%arg0: i32) -> (i32, i32) {
    %c0_i32 = arith.constant 0 : i32
    %c0_i32_0 = arith.constant 0 : i32
    %c0_i32_1 = arith.constant 0 : i32
    return %c0_i32, %c0_i32_0 : i32, i32
  }
  func.func @transform_11(%arg0: i32) -> (i32, i32) {
    %c0_i32 = arith.constant 0 : i32
    %c0_i32_0 = arith.constant 0 : i32
    %c0_i32_1 = arith.constant 0 : i32
    return %c0_i32, %c0_i32_0 : i32, i32
  }
  func.func @transform_12(%arg0: i32) -> (i32, i32) {
    %c0_i32 = arith.constant 0 : i32
    %c0_i32_0 = arith.constant 0 : i32
    %c0_i32_1 = arith.constant 0 : i32
    return %c0_i32, %c0_i32_0 : i32, i32
  }
  func.func @transform_13(%arg0: i32) -> (i32, i32) {
    %c0_i32 = arith.constant 0 : i32
    %c0_i32_0 = arith.constant 0 : i32
    %c0_i32_1 = arith.constant 0 : i32
    return %c0_i32, %c0_i32_0 : i32, i32
  }
  func.func @transform_14(%arg0: i32) -> (i32, i32) {
    %c0_i32 = arith.constant 0 : i32
    %c0_i32_0 = arith.constant 0 : i32
    %c0_i32_1 = arith.constant 0 : i32
    return %c0_i32, %c0_i32_0 : i32, i32
  }
  func.func @transform_15(%arg0: i32) -> (i32, i32) {
    %c0_i32 = arith.constant 0 : i32
    %c0_i32_0 = arith.constant 0 : i32
    %c0_i32_1 = arith.constant 0 : i32
    return %c0_i32, %c0_i32_0 : i32, i32
  }
  func.func @transform_16(%arg0: i32) -> (i32, i32) {
    %c0_i32 = arith.constant 0 : i32
    %c0_i32_0 = arith.constant 0 : i32
    %c0_i32_1 = arith.constant 0 : i32
    return %c0_i32, %c0_i32_0 : i32, i32
  }
  func.func @transform_17(%arg0: i32) -> (i32, i32) {
    %c0_i32 = arith.constant 0 : i32
    %c0_i32_0 = arith.constant 0 : i32
    %c0_i32_1 = arith.constant 0 : i32
    return %c0_i32, %c0_i32_0 : i32, i32
  }
}

</mosaic_0001>

<llo_original>
// kernel: tpu_custom_call.1
$region0: #{tpu_custom_call.1}
  #allocation0 [shape = 'u32[]', space=smem, size = 0x4, offset = 0x4, fixed_abs, tag = 'smem constant byte address 0x4 - core index']
  #allocation1 [shape = 'u32[144,128]{1,0:T(1,128)}', space=vmem, size = 0x12000, scoped, tag = 'internal scratch']
  %s0 = inlined_call_operand.vmem [shape: f32[16,32], index: 0, kind: input, shape index: {}]
  %s1 = inlined_call_operand.vmem [shape: f32[16,64], index: 1, kind: input, shape index: {}]
  %s2 = inlined_call_operand.vmem [shape: f32[64,16], index: 2, kind: input, shape index: {}]
  %s3 = inlined_call_operand.vmem [shape: f32[64,32], index: 3, kind: input, shape index: {}]
  %s4 = inlined_call_operand.vmem [shape: f32[64,64], index: 4, kind: input, shape index: {}]
  %s5 = inlined_call_operand.vmem [shape: f32[1,32], index: 5, kind: input, shape index: {}]
  %s6 = inlined_call_operand.vmem [shape: f32[1,32], index: 6, kind: input, shape index: {}]
  %s7 = inlined_call_operand.vmem [shape: f32[32,96], index: 7, kind: input, shape index: {}]
  %s8 = inlined_call_operand.vmem [shape: f32[1,96], index: 8, kind: input, shape index: {}]
  %s9 = inlined_call_operand.vmem [shape: f32[32,32], index: 9, kind: input, shape index: {}]
  %s10 = inlined_call_operand.vmem [shape: f32[1,32], index: 10, kind: input, shape index: {}]
  %s11 = inlined_call_operand.vmem [shape: f32[1,32], index: 11, kind: input, shape index: {}]
  %s12 = inlined_call_operand.vmem [shape: f32[1,32], index: 12, kind: input, shape index: {}]
  %s13 = inlined_call_operand.vmem [shape: f32[32,64], index: 13, kind: input, shape index: {}]
  %s14 = inlined_call_operand.vmem [shape: f32[1,64], index: 14, kind: input, shape index: {}]
  %s15 = inlined_call_operand.vmem [shape: f32[64,32], index: 15, kind: input, shape index: {}]
  %s16 = inlined_call_operand.vmem [shape: f32[1,32], index: 16, kind: input, shape index: {}]
  %s17 = inlined_call_operand.hbm [shape: f32[16,32], index: 17, kind: output, shape index: {}]
  %s18 = sld [smem:[#allocation0]]
  $region78: #{tpu_custom_call.1} parent=0
    _
  %s20 = ssub.s32 1, %s18
  %s21 = scalar_select 0, %s20, %s18
  $region1: #{tpu_custom_call.1} parent=0
    #allocation2 [shape = 'u8[8192]{0}', space=vmem, size = 0x2000, scoped, tag = 'output window, operand 0, single buffered']
    #allocation3 [shape = 's32[1]{0}', space=sflag, size = 0x4, scoped, tag = 'scoped memory for tpu_custom_call.1']
    %22 = vsyncpa [#allocation3], 0
    // Predicated region
    $region2: #{tpu_custom_call.1} parent=1 // pred_check
      _
    $region3: #{tpu_custom_call.1} parent=1 // pred_check_branch
      %24 = sbr.rel (0) target = $region5
    $region4: #{tpu_custom_call.1} parent=1 // pred_region
      _
    $region5: #{tpu_custom_call.1} parent=1 // pred_fallthru
      _
    // Predicated region
    $region6: #{tpu_custom_call.1} parent=1 // pred_check
      _
    $region7: #{tpu_custom_call.1} parent=1 // pred_check_branch
      %26 = sbr.rel (0) target = $region9
    $region8: #{tpu_custom_call.1} parent=1 // pred_region
      _
    $region9: #{tpu_custom_call.1} parent=1 // pred_fallthru
      _
    // Predicated region
    $region10: #{tpu_custom_call.1} parent=1 // pred_check
      _
    $region11: #{tpu_custom_call.1} parent=1 // pred_check_branch
      %28 = sbr.rel (0) target = $region13
    $region12: #{tpu_custom_call.1} parent=1 // pred_region
      _
    $region13: #{tpu_custom_call.1} parent=1 // pred_fallthru
      _
    // Predicated region
    $region14: #{tpu_custom_call.1} parent=1 // pred_check
      _
    $region15: #{tpu_custom_call.1} parent=1 // pred_check_branch
      %30 = sbr.rel (0) target = $region17
    $region16: #{tpu_custom_call.1} parent=1 // pred_region
      _
    $region17: #{tpu_custom_call.1} parent=1 // pred_fallthru
      _
    // Predicated region
    $region18: #{tpu_custom_call.1} parent=1 // pred_check
      _
    $region19: #{tpu_custom_call.1} parent=1 // pred_check_branch
      %32 = sbr.rel (0) target = $region21
    $region20: #{tpu_custom_call.1} parent=1 // pred_region
      _
    $region21: #{tpu_custom_call.1} parent=1 // pred_fallthru
      _
    // Predicated region
    $region22: #{tpu_custom_call.1} parent=1 // pred_check
      _
    $region23: #{tpu_custom_call.1} parent=1 // pred_check_branch
      %34 = sbr.rel (0) target = $region25
    $region24: #{tpu_custom_call.1} parent=1 // pred_region
      _
    $region25: #{tpu_custom_call.1} parent=1 // pred_fallthru
      _
    // Predicated region
    $region26: #{tpu_custom_call.1} parent=1 // pred_check
      _
    $region27: #{tpu_custom_call.1} parent=1 // pred_check_branch
      %36 = sbr.rel (0) target = $region29
    $region28: #{tpu_custom_call.1} parent=1 // pred_region
      _
    $region29: #{tpu_custom_call.1} parent=1 // pred_fallthru
      _
    // Predicated region
    $region30: #{tpu_custom_call.1} parent=1 // pred_check
      _
    $region31: #{tpu_custom_call.1} parent=1 // pred_check_branch
      %38 = sbr.rel (0) target = $region33
    $region32: #{tpu_custom_call.1} parent=1 // pred_region
      _
    $region33: #{tpu_custom_call.1} parent=1 // pred_fallthru
      _
    // Predicated region
    $region34: #{tpu_custom_call.1} parent=1 // pred_check
      _
    $region35: #{tpu_custom_call.1} parent=1 // pred_check_branch
      %40 = sbr.rel (0) target = $region37
    $region36: #{tpu_custom_call.1} parent=1 // pred_region
      _
    $region37: #{tpu_custom_call.1} parent=1 // pred_fallthru
      _
    // Predicated region
    $region38: #{tpu_custom_call.1} parent=1 // pred_check
      _
    $region39: #{tpu_custom_call.1} parent=1 // pred_check_branch
      %42 = sbr.rel (0) target = $region41
    $region40: #{tpu_custom_call.1} parent=1 // pred_region
      _
    $region41: #{tpu_custom_call.1} parent=1 // pred_fallthru
      _
    // Predicated region
    $region42: #{tpu_custom_call.1} parent=1 // pred_check
      _
    $region43: #{tpu_custom_call.1} parent=1 // pred_check_branch
      %44 = sbr.rel (0) target = $region45
    $region44: #{tpu_custom_call.1} parent=1 // pred_region
      _
    $region45: #{tpu_custom_call.1} parent=1 // pred_fallthru
      _
    // Predicated region
    $region46: #{tpu_custom_call.1} parent=1 // pred_check
      _
    $region47: #{tpu_custom_call.1} parent=1 // pred_check_branch
      %46 = sbr.rel (0) target = $region49
    $region48: #{tpu_custom_call.1} parent=1 // pred_region
      _
    $region49: #{tpu_custom_call.1} parent=1 // pred_fallthru
      _
    // Predicated region
    $region50: #{tpu_custom_call.1} parent=1 // pred_check
      _
    $region51: #{tpu_custom_call.1} parent=1 // pred_check_branch
      %48 = sbr.rel (0) target = $region53
    $region52: #{tpu_custom_call.1} parent=1 // pred_region
      _
    $region53: #{tpu_custom_call.1} parent=1 // pred_fallthru
      _
    // Predicated region
    $region54: #{tpu_custom_call.1} parent=1 // pred_check
      _
    $region55: #{tpu_custom_call.1} parent=1 // pred_check_branch
      %50 = sbr.rel (0) target = $region57
    $region56: #{tpu_custom_call.1} parent=1 // pred_region
      _
    $region57: #{tpu_custom_call.1} parent=1 // pred_fallthru
      _
    // Predicated region
    $region58: #{tpu_custom_call.1} parent=1 // pred_check
      _
    $region59: #{tpu_custom_call.1} parent=1 // pred_check_branch
      %52 = sbr.rel (0) target = $region61
    $region60: #{tpu_custom_call.1} parent=1 // pred_region
      _
    $region61: #{tpu_custom_call.1} parent=1 // pred_fallthru
      _
    // Predicated region
    $region62: #{tpu_custom_call.1} parent=1 // pred_check
      _
    $region63: #{tpu_custom_call.1} parent=1 // pred_check_branch
      %54 = sbr.rel (0) target = $region65
    $region64: #{tpu_custom_call.1} parent=1 // pred_region
      _
    $region65: #{tpu_custom_call.1} parent=1 // pred_fallthru
      _
    // Predicated region
    $region66: #{tpu_custom_call.1} parent=1 // pred_check
      _
    $region67: #{tpu_custom_call.1} parent=1 // pred_check_branch
      %56 = sbr.rel (0) target = $region69
    $region68: #{tpu_custom_call.1} parent=1 // pred_region
      _
    $region69: #{tpu_custom_call.1} parent=1 // pred_fallthru
      _
    %v57 = vld [vmem:[%s0] sm:$0xff]
    %v58 = vld [vmem:[%s0 + $0x8] sm:$0xff]
    %v59 = vld [vmem:[%s5] sm:$0x1]
    %v60 = vld [vmem:[%s6] sm:$0x1]
    %vm61 = vcmask 261120
    %v62 = vsel %vm61, %v57, 0.0
    %63 = vadd.xlane.f32.xlu0 %v62
    %v64 = vpop.xlane.xlu0 %63
    %v65 = vsel %vm61, %v58, 0.0
    %66 = vadd.xlane.f32.xlu0 %v65
    %v67 = vpop.xlane.xlu0 %66
    %v68 = vrcp.pop 32.0
    %v69 = vmul.f32 %v64, %v68
    %v70 = vmul.f32 %v67, %v68
    %v71 = vsub.f32 %v57, %v69
    %v72 = vsub.f32 %v58, %v70
    %v73 = vmul.f32 %v71, %v71
    %v74 = vmul.f32 %v72, %v72
    %v75 = vsel %vm61, %v73, 0.0
    %76 = vadd.xlane.f32.xlu0 %v75
    %v77 = vpop.xlane.xlu0 %76
    %v78 = vsel %vm61, %v74, 0.0
    %79 = vadd.xlane.f32.xlu0 %v78
    %v80 = vpop.xlane.xlu0 %79
    %v81 = vmul.f32 %v77, 0.032258064
    %v82 = vmul.f32 %v80, 0.032258064
    %v83 = vrsqrt.pop %v81
    %v84 = vmul.f32 %v81, %v83
    %vm85 = vcmp.eq.f32.partialorder %v81, inf
    %v86 = vsel %vm85, %v81, %v84
    %vm87 = vcmp.eq.f32.partialorder %v81, 0.0
    %v88 = vand.u32 %v81, 2147483648
    %v89 = vsel %vm87, %v88, %v86
    %v90 = vrsqrt.pop %v82
    %v91 = vmul.f32 %v82, %v90
    %vm92 = vcmp.eq.f32.partialorder %v82, inf
    %v93 = vsel %vm92, %v82, %v91
    %vm94 = vcmp.eq.f32.partialorder %v82, 0.0
    %v95 = vand.u32 %v82, 2147483648
    %v96 = vsel %vm94, %v95, %v93
    %v97 = vadd.f32 %v89, 1e-06
    %v98 = vadd.f32 %v96, 1e-06
    %v99 = vrcp.pop %v97
    %v100 = vrcp.pop %v98
    %v102 = vlaneseq
    %v103 = vshrl.u32 %v102, 7
    %v104 = vsub.s32 0, %v103
    %v105 = vrot.slane %v59, %v104
    %v107 = vmul.f32 %v105, %v71
    %v108 = vmul.f32 %v105, %v72
    %v109 = vmul.f32 %v107, %v99
    %v110 = vmul.f32 %v108, %v100
    %v112 = vlaneseq
    %v113 = vshrl.u32 %v112, 7
    %v114 = vsub.s32 0, %v113
    %v115 = vrot.slane %v60, %v114
    %v117 = vadd.f32 %v109, %v115
    %v118 = vadd.f32 %v110, %v115
    %v119 = vld [vmem:[%s7] sm:$0xff]
    %v120 = vld [vmem:[%s7 + $0x8] sm:$0xff]
    %v121 = vld [vmem:[%s7 + $0x10] sm:$0xff]
    %v122 = vld [vmem:[%s7 + $0x18] sm:$0xff]
    %v123 = vld [vmem:[%s8] sm:$0x1]
    %v125 = vlaneseq
    %v126 = vshrl.u32 %v125, 7
    %v127 = vsub.s32 0, %v126
    %v128 = vrot.slane %v123, %v127
    %v131 = vsel %vm61, %v117, 0
    %v134 = vsel %vm61, %v118, 0
    %136 = vmatprep.subr.mxu0 0.0
    %137 = vmatpush1.msra.mxu0 0.0
    %138 = vmatprep.subr.mxu0 0.0
    %139 = vmatpush1.msra.mxu0 0.0
    %140 = vmatprep.subr.mxu0 0.0
    %141 = vmatpush1.msra.mxu0 0.0
    %142 = vmatprep.subr.mxu0 0.0
    %143 = vmatpush1.msra.mxu0 0.0
    %144 = vmatprep.subr.mxu0 0.0
    %145 = vmatpush1.msra.mxu0 0.0
    %146 = vmatprep.subr.mxu0 0.0
    %147 = vmatpush1.msra.mxu0 0.0
    %148 = vmatprep.subr.mxu0 0.0
    %149 = vmatpush1.msra.mxu0 0.0
    %150 = vmatprep.subr.mxu0 0.0
    %151 = vmatpush1.msra.mxu0 0.0
    %152 = vmatprep.subr.mxu0 0.0
    %153 = vmatpush1.msra.mxu0 0.0
    %154 = vmatprep.subr.mxu0 0.0
    %155 = vmatpush1.msra.mxu0 0.0
    %156 = vmatprep.subr.mxu0 0.0
    %157 = vmatpush1.msra.mxu0 0.0
    %158 = vmatprep.subr.mxu0 0.0
    %159 = vmatpush1.msra.mxu0 0.0
    %160 = vmatprep.subr.mxu0 0.0
    %161 = vmatpush1.msra.mxu0 %v122
    %162 = vmatprep.subr.mxu0 0.0
    %163 = vmatpush1.msra.mxu0 %v121
    %164 = vmatprep.subr.mxu0 0.0
    %165 = vmatpush1.msra.mxu0 %v120
    %166 = vmatprep.subr.mxu0 0.0
    %167 = vmatpush1.msra.mxu0 %v119
    %168 = vmatprep.subr.mxu0 0.0
    %169 = vmatpush2.msra.mxu0 0.0
    %170 = vmatprep.subr.mxu0 0.0
    %171 = vmatpush2.msra.mxu0 0.0
    %172 = vmatprep.subr.mxu0 0.0
    %173 = vmatpush2.msra.mxu0 0.0
    %174 = vmatprep.subr.mxu0 0.0
    %175 = vmatpush2.msra.mxu0 0.0
    %176 = vmatprep.subr.mxu0 0.0
    %177 = vmatpush2.msra.mxu0 0.0
    %178 = vmatprep.subr.mxu0 0.0
    %179 = vmatpush2.msra.mxu0 0.0
    %180 = vmatprep.subr.mxu0 0.0
    %181 = vmatpush2.msra.mxu0 0.0
    %182 = vmatprep.subr.mxu0 0.0
    %183 = vmatpush2.msra.mxu0 0.0
    %184 = vmatprep.subr.mxu0 0.0
    %185 = vmatpush2.msra.mxu0 0.0
    %186 = vmatprep.subr.mxu0 0.0
    %187 = vmatpush2.msra.mxu0 0.0
    %188 = vmatprep.subr.mxu0 0.0
    %189 = vmatpush2.msra.mxu0 0.0
    %190 = vmatprep.subr.mxu0 0.0
    %191 = vmatpush2.msra.mxu0 0.0
    %192 = vmatprep.subr.mxu0 0.0
    %193 = vmatpush2.msra.mxu0 0.0
    %194 = vmatprep.subr.mxu0 0.0
    %195 = vmatpush2.msra.mxu0 0.0
    %196 = vmatprep.subr.mxu0 0.0
    %197 = vmatpush2.msra.mxu0 0.0
    %198 = vmatprep.subr.mxu0 0.0
    %199 = vmatpush2.msra.mxu0 0.0
    %200 = vmatprep.mubr.f32.mxu0 0.0
    %201 = vmatmul.mubr.f32.gmra.mxu0 %v131
    %v202 = vpop.f32.mrf.mxu0
    %v203 = vadd.f32 %v128, %v202
    %v204 = vpop.f32.mrf.mxu0
    %205 = vmatprep.mubr.f32.mxu0 0.0
    %206 = vmatmul.mubr.f32.gmra.mxu0 %v134
    %v207 = vpop.f32.mrf.mxu0
    %v208 = vadd.f32 %v128, %v207
    %v209 = vpop.f32.mrf.mxu0
    %210 = vdwg.mxu0
    %v211 = vld [vmem:[%s3] sm:$0xff]
    %v212 = vld [vmem:[%s3 + $0x8] sm:$0xff]
    %v213 = vld [vmem:[%s3 + $0x10] sm:$0xff]
    %v214 = vld [vmem:[%s3 + $0x18] sm:$0xff]
    %v215 = vld [vmem:[%s3 + $0x20] sm:$0xff]
    %v216 = vld [vmem:[%s3 + $0x28] sm:$0xff]
    %v217 = vld [vmem:[%s3 + $0x30] sm:$0xff]
    %v218 = vld [vmem:[%s3 + $0x38] sm:$0xff]
    %v219 = vld [vmem:[%s2] sm:$0xff]
    %v220 = vld [vmem:[%s2 + $0x8] sm:$0xff]
    %v221 = vld [vmem:[%s2 + $0x10] sm:$0xff]
    %v222 = vld [vmem:[%s2 + $0x18] sm:$0xff]
    %v223 = vld [vmem:[%s2 + $0x20] sm:$0xff]
    %v224 = vld [vmem:[%s2 + $0x28] sm:$0xff]
    %v225 = vld [vmem:[%s2 + $0x30] sm:$0xff]
    %v226 = vld [vmem:[%s2 + $0x38] sm:$0xff]
    %229 = vrot.lane.b32.xlu0 %v203, 96
    %v230 = vpop.permute.xlu0 %229
    %231 = vrot.lane.b32.xlu0 %v208, 96
    %v232 = vpop.permute.xlu0 %231
    %vm235 = vcmask 130048
    %v237 = vsel %vm235, %v219, 0
    %v240 = vsel %vm235, %v220, 0
    %v243 = vsel %vm235, %v221, 0
    %v246 = vsel %vm235, %v222, 0
    %v249 = vsel %vm235, %v223, 0
    %v252 = vsel %vm235, %v224, 0
    %v255 = vsel %vm235, %v225, 0
    %v258 = vsel %vm235, %v226, 0
    %260 = vmatprep.subr.mxu0 0.0
    %261 = vmatpush1.msra.mxu0 0.0
    %262 = vmatprep.subr.mxu0 0.0
    %263 = vmatpush1.msra.mxu0 0.0
    %264 = vmatprep.subr.mxu0 0.0
    %265 = vmatpush1.msra.mxu0 0.0
    %266 = vmatprep.subr.mxu0 0.0
    %267 = vmatpush1.msra.mxu0 0.0
    %268 = vmatprep.subr.mxu0 0.0
    %269 = vmatpush1.msra.mxu0 0.0
    %270 = vmatprep.subr.mxu0 0.0
    %271 = vmatpush1.msra.mxu0 0.0
    %272 = vmatprep.subr.mxu0 0.0
    %273 = vmatpush1.msra.mxu0 0.0
    %274 = vmatprep.subr.mxu0 0.0
    %275 = vmatpush1.msra.mxu0 0.0
    %276 = vmatprep.subr.mxu0 0.0
    %277 = vmatpush1.msra.mxu0 0.0
    %278 = vmatprep.subr.mxu0 0.0
    %279 = vmatpush1.msra.mxu0 0.0
    %280 = vmatprep.subr.mxu0 0.0
    %281 = vmatpush1.msra.mxu0 0.0
    %282 = vmatprep.subr.mxu0 0.0
    %283 = vmatpush1.msra.mxu0 0.0
    %284 = vmatprep.subr.mxu0 0.0
    %285 = vmatpush1.msra.mxu0 0.0
    %286 = vmatprep.subr.mxu0 0.0
    %287 = vmatpush1.msra.mxu0 0.0
    %288 = vmatprep.subr.mxu0 0.0
    %289 = vmatpush1.msra.mxu0 %v232
    %290 = vmatprep.subr.mxu0 0.0
    %291 = vmatpush1.msra.mxu0 %v230
    %292 = vmatprep.subr.mxu0 0.0
    %293 = vmatpush2.msra.mxu0 0.0
    %294 = vmatprep.subr.mxu0 0.0
    %295 = vmatpush2.msra.mxu0 0.0
    %296 = vmatprep.subr.mxu0 0.0
    %297 = vmatpush2.msra.mxu0 0.0
    %298 = vmatprep.subr.mxu0 0.0
    %299 = vmatpush2.msra.mxu0 0.0
    %300 = vmatprep.subr.mxu0 0.0
    %301 = vmatpush2.msra.mxu0 0.0
    %302 = vmatprep.subr.mxu0 0.0
    %303 = vmatpush2.msra.mxu0 0.0
    %304 = vmatprep.subr.mxu0 0.0
    %305 = vmatpush2.msra.mxu0 0.0
    %306 = vmatprep.subr.mxu0 0.0
    %307 = vmatpush2.msra.mxu0 0.0
    %308 = vmatprep.subr.mxu0 0.0
    %309 = vmatpush2.msra.mxu0 0.0
    %310 = vmatprep.subr.mxu0 0.0
    %311 = vmatpush2.msra.mxu0 0.0
    %312 = vmatprep.subr.mxu0 0.0
    %313 = vmatpush2.msra.mxu0 0.0
    %314 = vmatprep.subr.mxu0 0.0
    %315 = vmatpush2.msra.mxu0 0.0
    %316 = vmatprep.subr.mxu0 0.0
    %317 = vmatpush2.msra.mxu0 0.0
    %318 = vmatprep.subr.mxu0 0.0
    %319 = vmatpush2.msra.mxu0 0.0
    %320 = vmatprep.subr.mxu0 0.0
    %321 = vmatpush2.msra.mxu0 0.0
    %322 = vmatprep.subr.mxu0 0.0
    %323 = vmatpush2.msra.mxu0 0.0
    %324 = vmatprep.mubr.f32.mxu0 0.0
    %325 = vmatmul.mubr.f32.gmra.mxu0 %v237
    %v326 = vpop.f32.mrf.mxu0
    %v327 = vadd.f32 0.0, %v326
    %v328 = vpop.f32.mrf.mxu0
    %329 = vmatprep.mubr.f32.mxu0 0.0
    %330 = vmatmul.mubr.f32.gmra.mxu0 %v240
    %v331 = vpop.f32.mrf.mxu0
    %v332 = vadd.f32 0.0, %v331
    %v333 = vpop.f32.mrf.mxu0
    %334 = vmatprep.mubr.f32.mxu0 0.0
    %335 = vmatmul.mubr.f32.gmra.mxu0 %v243
    %v336 = vpop.f32.mrf.mxu0
    %v337 = vadd.f32 0.0, %v336
    %v338 = vpop.f32.mrf.mxu0
    %339 = vmatprep.mubr.f32.mxu0 0.0
    %340 = vmatmul.mubr.f32.gmra.mxu0 %v246
    %v341 = vpop.f32.mrf.mxu0
    %v342 = vadd.f32 0.0, %v341
    %v343 = vpop.f32.mrf.mxu0
    %344 = vmatprep.mubr.f32.mxu0 0.0
    %345 = vmatmul.mubr.f32.gmra.mxu0 %v249
    %v346 = vpop.f32.mrf.mxu0
    %v347 = vadd.f32 0.0, %v346
    %v348 = vpop.f32.mrf.mxu0
    %349 = vmatprep.mubr.f32.mxu0 0.0
    %350 = vmatmul.mubr.f32.gmra.mxu0 %v252
    %v351 = vpop.f32.mrf.mxu0
    %v352 = vadd.f32 0.0, %v351
    %v353 = vpop.f32.mrf.mxu0
    %354 = vmatprep.mubr.f32.mxu0 0.0
    %355 = vmatmul.mubr.f32.gmra.mxu0 %v255
    %v356 = vpop.f32.mrf.mxu0
    %v357 = vadd.f32 0.0, %v356
    %v358 = vpop.f32.mrf.mxu0
    %359 = vmatprep.mubr.f32.mxu0 0.0
    %360 = vmatmul.mubr.f32.gmra.mxu0 %v258
    %v361 = vpop.f32.mrf.mxu0
    %v362 = vadd.f32 0.0, %v361
    %v363 = vpop.f32.mrf.mxu0
    %364 = vdwg.mxu0
    %v365 = vmul.f32 %v327, %v211
    %v366 = vmul.f32 %v332, %v212
    %v367 = vmul.f32 %v337, %v213
    %v368 = vmul.f32 %v342, %v214
    %v369 = vmul.f32 %v347, %v215
    %v370 = vmul.f32 %v352, %v216
    %v371 = vmul.f32 %v357, %v217
    %v372 = vmul.f32 %v362, %v218
    %373 = vrot.lane.b32.xlu0 %v203, 64
    %v374 = vpop.permute.xlu0 %373
    %375 = vrot.lane.b32.xlu0 %v208, 64
    %v376 = vpop.permute.xlu0 %375
    %379 = vmatprep.subr.mxu0 0.0
    %380 = vmatpush1.msra.mxu0 0.0
    %381 = vmatprep.subr.mxu0 0.0
    %382 = vmatpush1.msra.mxu0 0.0
    %383 = vmatprep.subr.mxu0 0.0
    %384 = vmatpush1.msra.mxu0 0.0
    %385 = vmatprep.subr.mxu0 0.0
    %386 = vmatpush1.msra.mxu0 0.0
    %387 = vmatprep.subr.mxu0 0.0
    %388 = vmatpush1.msra.mxu0 0.0
    %389 = vmatprep.subr.mxu0 0.0
    %390 = vmatpush1.msra.mxu0 0.0
    %391 = vmatprep.subr.mxu0 0.0
    %392 = vmatpush1.msra.mxu0 0.0
    %393 = vmatprep.subr.mxu0 0.0
    %394 = vmatpush1.msra.mxu0 0.0
    %395 = vmatprep.subr.mxu0 0.0
    %396 = vmatpush1.msra.mxu0 0.0
    %397 = vmatprep.subr.mxu0 0.0
    %398 = vmatpush1.msra.mxu0 0.0
    %399 = vmatprep.subr.mxu0 0.0
    %400 = vmatpush1.msra.mxu0 0.0
    %401 = vmatprep.subr.mxu0 0.0
    %402 = vmatpush1.msra.mxu0 0.0
    %403 = vmatprep.subr.mxu0 0.0
    %404 = vmatpush1.msra.mxu0 0.0
    %405 = vmatprep.subr.mxu0 0.0
    %406 = vmatpush1.msra.mxu0 0.0
    %407 = vmatprep.subr.mxu0 0.0
    %408 = vmatpush1.msra.mxu0 %v376
    %409 = vmatprep.subr.mxu0 0.0
    %410 = vmatpush1.msra.mxu0 %v374
    %411 = vmatprep.subr.mxu0 0.0
    %412 = vmatpush2.msra.mxu0 0.0
    %413 = vmatprep.subr.mxu0 0.0
    %414 = vmatpush2.msra.mxu0 0.0
    %415 = vmatprep.subr.mxu0 0.0
    %416 = vmatpush2.msra.mxu0 0.0
    %417 = vmatprep.subr.mxu0 0.0
    %418 = vmatpush2.msra.mxu0 0.0
    %419 = vmatprep.subr.mxu0 0.0
    %420 = vmatpush2.msra.mxu0 0.0
    %421 = vmatprep.subr.mxu0 0.0
    %422 = vmatpush2.msra.mxu0 0.0
    %423 = vmatprep.subr.mxu0 0.0
    %424 = vmatpush2.msra.mxu0 0.0
    %425 = vmatprep.subr.mxu0 0.0
    %426 = vmatpush2.msra.mxu0 0.0
    %427 = vmatprep.subr.mxu0 0.0
    %428 = vmatpush2.msra.mxu0 0.0
    %429 = vmatprep.subr.mxu0 0.0
    %430 = vmatpush2.msra.mxu0 0.0
    %431 = vmatprep.subr.mxu0 0.0
    %432 = vmatpush2.msra.mxu0 0.0
    %433 = vmatprep.subr.mxu0 0.0
    %434 = vmatpush2.msra.mxu0 0.0
    %435 = vmatprep.subr.mxu0 0.0
    %436 = vmatpush2.msra.mxu0 0.0
    %437 = vmatprep.subr.mxu0 0.0
    %438 = vmatpush2.msra.mxu0 0.0
    %439 = vmatprep.subr.mxu0 0.0
    %440 = vmatpush2.msra.mxu0 0.0
    %441 = vmatprep.subr.mxu0 0.0
    %442 = vmatpush2.msra.mxu0 0.0
    %443 = vmatprep.mubr.f32.mxu0 0.0
    %444 = vmatmul.mubr.f32.gmra.mxu0 %v237
    %v445 = vpop.f32.mrf.mxu0
    %v446 = vadd.f32 0.0, %v445
    %v447 = vpop.f32.mrf.mxu0
    %448 = vmatprep.mubr.f32.mxu0 0.0
    %449 = vmatmul.mubr.f32.gmra.mxu0 %v240
    %v450 = vpop.f32.mrf.mxu0
    %v451 = vadd.f32 0.0, %v450
    %v452 = vpop.f32.mrf.mxu0
    %453 = vmatprep.mubr.f32.mxu0 0.0
    %454 = vmatmul.mubr.f32.gmra.mxu0 %v243
    %v455 = vpop.f32.mrf.mxu0
    %v456 = vadd.f32 0.0, %v455
    %v457 = vpop.f32.mrf.mxu0
    %458 = vmatprep.mubr.f32.mxu0 0.0
    %459 = vmatmul.mubr.f32.gmra.mxu0 %v246
    %v460 = vpop.f32.mrf.mxu0
    %v461 = vadd.f32 0.0, %v460
    %v462 = vpop.f32.mrf.mxu0
    %463 = vmatprep.mubr.f32.mxu0 0.0
    %464 = vmatmul.mubr.f32.gmra.mxu0 %v249
    %v465 = vpop.f32.mrf.mxu0
    %v466 = vadd.f32 0.0, %v465
    %v467 = vpop.f32.mrf.mxu0
    %468 = vmatprep.mubr.f32.mxu0 0.0
    %469 = vmatmul.mubr.f32.gmra.mxu0 %v252
    %v470 = vpop.f32.mrf.mxu0
    %v471 = vadd.f32 0.0, %v470
    %v472 = vpop.f32.mrf.mxu0
    %473 = vmatprep.mubr.f32.mxu0 0.0
    %474 = vmatmul.mubr.f32.gmra.mxu0 %v255
    %v475 = vpop.f32.mrf.mxu0
    %v476 = vadd.f32 0.0, %v475
    %v477 = vpop.f32.mrf.mxu0
    %478 = vmatprep.mubr.f32.mxu0 0.0
    %479 = vmatmul.mubr.f32.gmra.mxu0 %v258
    %v480 = vpop.f32.mrf.mxu0
    %v481 = vadd.f32 0.0, %v480
    %v482 = vpop.f32.mrf.mxu0
    %483 = vdwg.mxu0
    %v484 = vmul.f32 %v446, %v211
    %v485 = vmul.f32 %v451, %v212
    %v486 = vmul.f32 %v456, %v213
    %v487 = vmul.f32 %v461, %v214
    %v488 = vmul.f32 %v466, %v215
    %v489 = vmul.f32 %v471, %v216
    %v490 = vmul.f32 %v476, %v217
    %v491 = vmul.f32 %v481, %v218
    %v492 = vld [vmem:[%s1] sm:$0xff]
    %v493 = vld [vmem:[%s1 + $0x8] sm:$0xff]
    %v494 = vsel %vm61, %v203, 0
    %v496 = vsel %vm61, %v208, 0
    %v499 = vsel %vm61, %v365, 0
    %v502 = vsel %vm61, %v366, 0
    %v505 = vsel %vm61, %v367, 0
    %v508 = vsel %vm61, %v368, 0
    %v511 = vsel %vm61, %v369, 0
    %v514 = vsel %vm61, %v370, 0
    %v517 = vsel %vm61, %v371, 0
    %v520 = vsel %vm61, %v372, 0
    %522 = vmatprep.subr.mxu0 0.0
    %523 = vmatpush1.xpose.msra.mxu0 0.0
    %524 = vmatprep.subr.mxu0 0.0
    %525 = vmatpush1.xpose.msra.mxu0 0.0
    %526 = vmatprep.subr.mxu0 0.0
    %527 = vmatpush1.xpose.msra.mxu0 0.0
    %528 = vmatprep.subr.mxu0 0.0
    %529 = vmatpush1.xpose.msra.mxu0 0.0
    %530 = vmatprep.subr.mxu0 0.0
    %531 = vmatpush1.xpose.msra.mxu0 0.0
    %532 = vmatprep.subr.mxu0 0.0
    %533 = vmatpush1.xpose.msra.mxu0 0.0
    %534 = vmatprep.subr.mxu0 0.0
    %535 = vmatpush1.xpose.msra.mxu0 0.0
    %536 = vmatprep.subr.mxu0 0.0
    %537 = vmatpush1.xpose.msra.mxu0 0.0
    %538 = vmatprep.subr.mxu0 0.0
    %539 = vmatpush1.xpose.msra.mxu0 %v520
    %540 = vmatprep.subr.mxu0 0.0
    %541 = vmatpush1.xpose.msra.mxu0 %v517
    %542 = vmatprep.subr.mxu0 0.0
    %543 = vmatpush1.xpose.msra.mxu0 %v514
    %544 = vmatprep.subr.mxu0 0.0
    %545 = vmatpush1.xpose.msra.mxu0 %v511
    %546 = vmatprep.subr.mxu0 0.0
    %547 = vmatpush1.xpose.msra.mxu0 %v508
    %548 = vmatprep.subr.mxu0 0.0
    %549 = vmatpush1.xpose.msra.mxu0 %v505
    %550 = vmatprep.subr.mxu0 0.0
    %551 = vmatpush1.xpose.msra.mxu0 %v502
    %552 = vmatprep.subr.mxu0 0.0
    %553 = vmatpush1.xpose.msra.mxu0 %v499
    %554 = vmatprep.subr.mxu0 0.0
    %555 = vmatpush2.xpose.msra.mxu0 0.0
    %556 = vmatprep.subr.mxu0 0.0
    %557 = vmatpush2.xpose.msra.mxu0 0.0
    %558 = vmatprep.subr.mxu0 0.0
    %559 = vmatpush2.xpose.msra.mxu0 0.0
    %560 = vmatprep.subr.mxu0 0.0
    %561 = vmatpush2.xpose.msra.mxu0 0.0
    %562 = vmatprep.subr.mxu0 0.0
    %563 = vmatpush2.xpose.msra.mxu0 0.0
    %564 = vmatprep.subr.mxu0 0.0
    %565 = vmatpush2.xpose.msra.mxu0 0.0
    %566 = vmatprep.subr.mxu0 0.0
    %567 = vmatpush2.xpose.msra.mxu0 0.0
    %568 = vmatprep.subr.mxu0 0.0
    %569 = vmatpush2.xpose.msra.mxu0 0.0
    %570 = vmatprep.subr.mxu0 0.0
    %571 = vmatpush2.xpose.msra.mxu0 0.0
    %572 = vmatprep.subr.mxu0 0.0
    %573 = vmatpush2.xpose.msra.mxu0 0.0
    %574 = vmatprep.subr.mxu0 0.0
    %575 = vmatpush2.xpose.msra.mxu0 0.0
    %576 = vmatprep.subr.mxu0 0.0
    %577 = vmatpush2.xpose.msra.mxu0 0.0
    %578 = vmatprep.subr.mxu0 0.0
    %579 = vmatpush2.xpose.msra.mxu0 0.0
    %580 = vmatprep.subr.mxu0 0.0
    %581 = vmatpush2.xpose.msra.mxu0 0.0
    %582 = vmatprep.subr.mxu0 0.0
    %583 = vmatpush2.xpose.msra.mxu0 0.0
    %584 = vmatprep.subr.mxu0 0.0
    %585 = vmatpush2.xpose.msra.mxu0 0.0
    %586 = vmatprep.mubr.f32.mxu0 0.0
    %587 = vmatmul.mubr.f32.gmra.mxu0 %v494
    %v588 = vpop.f32.mrf.mxu0
    %v589 = vadd.f32 %v492, %v588
    %v590 = vpop.f32.mrf.mxu0
    %591 = vmatprep.mubr.f32.mxu0 0.0
    %592 = vmatmul.mubr.f32.gmra.mxu0 %v496
    %v593 = vpop.f32.mrf.mxu0
    %v594 = vadd.f32 %v493, %v593
    %v595 = vpop.f32.mrf.mxu0
    %596 = vdwg.mxu0
    %vm597 = vcmask 523264
    %v598 = vsel %vm597, %v589, -inf
    %599 = vmax.xlane.f32.xlu0 %v598
    %v600 = vpop.xlane.xlu0 %599
    %v601 = vsel %vm597, %v594, -inf
    %602 = vmax.xlane.f32.xlu0 %v601
    %v603 = vpop.xlane.xlu0 %602
    %v604 = vsub.f32 %v589, %v600
    %v605 = vsub.f32 %v594, %v603
    %v606 = vmul.f32 %v604, 1.442695
    %v607 = vpow.pop %v606
    %v608 = vmul.f32 %v605, 1.442695
    %v609 = vpow.pop %v608
    %v610 = vld [vmem:[%s4] sm:$0xff]
    %v611 = vld [vmem:[%s4 + $0x8] sm:$0xff]
    %v612 = vld [vmem:[%s4 + $0x10] sm:$0xff]
    %v613 = vld [vmem:[%s4 + $0x18] sm:$0xff]
    %v614 = vld [vmem:[%s4 + $0x20] sm:$0xff]
    %v615 = vld [vmem:[%s4 + $0x28] sm:$0xff]
    %v616 = vld [vmem:[%s4 + $0x30] sm:$0xff]
    %v617 = vld [vmem:[%s4 + $0x38] sm:$0xff]
    %v619 = vsel %vm597, %v607, 0
    %v622 = vsel %vm597, %v609, 0
    %624 = vmatprep.subr.mxu0 0.0
    %625 = vmatpush1.msra.mxu0 0.0
    %626 = vmatprep.subr.mxu0 0.0
    %627 = vmatpush1.msra.mxu0 0.0
    %628 = vmatprep.subr.mxu0 0.0
    %629 = vmatpush1.msra.mxu0 0.0
    %630 = vmatprep.subr.mxu0 0.0
    %631 = vmatpush1.msra.mxu0 0.0
    %632 = vmatprep.subr.mxu0 0.0
    %633 = vmatpush1.msra.mxu0 0.0
    %634 = vmatprep.subr.mxu0 0.0
    %635 = vmatpush1.msra.mxu0 0.0
    %636 = vmatprep.subr.mxu0 0.0
    %637 = vmatpush1.msra.mxu0 0.0
    %638 = vmatprep.subr.mxu0 0.0
    %639 = vmatpush1.msra.mxu0 0.0
    %640 = vmatprep.subr.mxu0 0.0
    %641 = vmatpush1.msra.mxu0 %v617
    %642 = vmatprep.subr.mxu0 0.0
    %643 = vmatpush1.msra.mxu0 %v616
    %644 = vmatprep.subr.mxu0 0.0
    %645 = vmatpush1.msra.mxu0 %v615
    %646 = vmatprep.subr.mxu0 0.0
    %647 = vmatpush1.msra.mxu0 %v614
    %648 = vmatprep.subr.mxu0 0.0
    %649 = vmatpush1.msra.mxu0 %v613
    %650 = vmatprep.subr.mxu0 0.0
    %651 = vmatpush1.msra.mxu0 %v612
    %652 = vmatprep.subr.mxu0 0.0
    %653 = vmatpush1.msra.mxu0 %v611
    %654 = vmatprep.subr.mxu0 0.0
    %655 = vmatpush1.msra.mxu0 %v610
    %656 = vmatprep.subr.mxu0 0.0
    %657 = vmatpush2.msra.mxu0 0.0
    %658 = vmatprep.subr.mxu0 0.0
    %659 = vmatpush2.msra.mxu0 0.0
    %660 = vmatprep.subr.mxu0 0.0
    %661 = vmatpush2.msra.mxu0 0.0
    %662 = vmatprep.subr.mxu0 0.0
    %663 = vmatpush2.msra.mxu0 0.0
    %664 = vmatprep.subr.mxu0 0.0
    %665 = vmatpush2.msra.mxu0 0.0
    %666 = vmatprep.subr.mxu0 0.0
    %667 = vmatpush2.msra.mxu0 0.0
    %668 = vmatprep.subr.mxu0 0.0
    %669 = vmatpush2.msra.mxu0 0.0
    %670 = vmatprep.subr.mxu0 0.0
    %671 = vmatpush2.msra.mxu0 0.0
    %672 = vmatprep.subr.mxu0 0.0
    %673 = vmatpush2.msra.mxu0 0.0
    %674 = vmatprep.subr.mxu0 0.0
    %675 = vmatpush2.msra.mxu0 0.0
    %676 = vmatprep.subr.mxu0 0.0
    %677 = vmatpush2.msra.mxu0 0.0
    %678 = vmatprep.subr.mxu0 0.0
    %679 = vmatpush2.msra.mxu0 0.0
    %680 = vmatprep.subr.mxu0 0.0
    %681 = vmatpush2.msra.mxu0 0.0
    %682 = vmatprep.subr.mxu0 0.0
    %683 = vmatpush2.msra.mxu0 0.0
    %684 = vmatprep.subr.mxu0 0.0
    %685 = vmatpush2.msra.mxu0 0.0
    %686 = vmatprep.subr.mxu0 0.0
    %687 = vmatpush2.msra.mxu0 0.0
    %688 = vmatprep.mubr.f32.mxu0 0.0
    %689 = vmatmul.mubr.f32.gmra.mxu0 %v619
    %v690 = vpop.f32.mrf.mxu0
    %v691 = vadd.f32 0.0, %v690
    %v692 = vpop.f32.mrf.mxu0
    %693 = vmatprep.mubr.f32.mxu0 0.0
    %694 = vmatmul.mubr.f32.gmra.mxu0 %v622
    %v695 = vpop.f32.mrf.mxu0
    %v696 = vadd.f32 0.0, %v695
    %v697 = vpop.f32.mrf.mxu0
    %698 = vdwg.mxu0
    %v699 = vrcp.pop %v691
    %v700 = vrcp.pop %v696
    %v701 = vmul.f32 %v607, %v699
    %v702 = vmul.f32 %v609, %v700
    %v704 = vsel %vm597, %v701, 0
    %v707 = vsel %vm597, %v702, 0
    %709 = vmatprep.subr.mxu0 0.0
    %710 = vmatpush1.msra.mxu0 0.0
    %711 = vmatprep.subr.mxu0 0.0
    %712 = vmatpush1.msra.mxu0 0.0
    %713 = vmatprep.subr.mxu0 0.0
    %714 = vmatpush1.msra.mxu0 0.0
    %715 = vmatprep.subr.mxu0 0.0
    %716 = vmatpush1.msra.mxu0 0.0
    %717 = vmatprep.subr.mxu0 0.0
    %718 = vmatpush1.msra.mxu0 0.0
    %719 = vmatprep.subr.mxu0 0.0
    %720 = vmatpush1.msra.mxu0 0.0
    %721 = vmatprep.subr.mxu0 0.0
    %722 = vmatpush1.msra.mxu0 0.0
    %723 = vmatprep.subr.mxu0 0.0
    %724 = vmatpush1.msra.mxu0 0.0
    %725 = vmatprep.subr.mxu0 0.0
    %726 = vmatpush1.msra.mxu0 %v491
    %727 = vmatprep.subr.mxu0 0.0
    %728 = vmatpush1.msra.mxu0 %v490
    %729 = vmatprep.subr.mxu0 0.0
    %730 = vmatpush1.msra.mxu0 %v489
    %731 = vmatprep.subr.mxu0 0.0
    %732 = vmatpush1.msra.mxu0 %v488
    %733 = vmatprep.subr.mxu0 0.0
    %734 = vmatpush1.msra.mxu0 %v487
    %735 = vmatprep.subr.mxu0 0.0
    %736 = vmatpush1.msra.mxu0 %v486
    %737 = vmatprep.subr.mxu0 0.0
    %738 = vmatpush1.msra.mxu0 %v485
    %739 = vmatprep.subr.mxu0 0.0
    %740 = vmatpush1.msra.mxu0 %v484
    %741 = vmatprep.subr.mxu0 0.0
    %742 = vmatpush2.msra.mxu0 0.0
    %743 = vmatprep.subr.mxu0 0.0
    %744 = vmatpush2.msra.mxu0 0.0
    %745 = vmatprep.subr.mxu0 0.0
    %746 = vmatpush2.msra.mxu0 0.0
    %747 = vmatprep.subr.mxu0 0.0
    %748 = vmatpush2.msra.mxu0 0.0
    %749 = vmatprep.subr.mxu0 0.0
    %750 = vmatpush2.msra.mxu0 0.0
    %751 = vmatprep.subr.mxu0 0.0
    %752 = vmatpush2.msra.mxu0 0.0
    %753 = vmatprep.subr.mxu0 0.0
    %754 = vmatpush2.msra.mxu0 0.0
    %755 = vmatprep.subr.mxu0 0.0
    %756 = vmatpush2.msra.mxu0 0.0
    %757 = vmatprep.subr.mxu0 0.0
    %758 = vmatpush2.msra.mxu0 0.0
    %759 = vmatprep.subr.mxu0 0.0
    %760 = vmatpush2.msra.mxu0 0.0
    %761 = vmatprep.subr.mxu0 0.0
    %762 = vmatpush2.msra.mxu0 0.0
    %763 = vmatprep.subr.mxu0 0.0
    %764 = vmatpush2.msra.mxu0 0.0
    %765 = vmatprep.subr.mxu0 0.0
    %766 = vmatpush2.msra.mxu0 0.0
    %767 = vmatprep.subr.mxu0 0.0
    %768 = vmatpush2.msra.mxu0 0.0
    %769 = vmatprep.subr.mxu0 0.0
    %770 = vmatpush2.msra.mxu0 0.0
    %771 = vmatprep.subr.mxu0 0.0
    %772 = vmatpush2.msra.mxu0 0.0
    %773 = vmatprep.mubr.f32.mxu0 0.0
    %774 = vmatmul.mubr.f32.gmra.mxu0 %v704
    %v775 = vpop.f32.mrf.mxu0
    %v776 = vadd.f32 0.0, %v775
    %v777 = vpop.f32.mrf.mxu0
    %778 = vmatprep.mubr.f32.mxu0 0.0
    %779 = vmatmul.mubr.f32.gmra.mxu0 %v707
    %v780 = vpop.f32.mrf.mxu0
    %v781 = vadd.f32 0.0, %v780
    %v782 = vpop.f32.mrf.mxu0
    %783 = vdwg.mxu0
    %v784 = vld [vmem:[%s9] sm:$0xff]
    %v785 = vld [vmem:[%s9 + $0x8] sm:$0xff]
    %v786 = vld [vmem:[%s9 + $0x10] sm:$0xff]
    %v787 = vld [vmem:[%s9 + $0x18] sm:$0xff]
    %v788 = vld [vmem:[%s10] sm:$0x1]
    %v790 = vlaneseq
    %v791 = vshrl.u32 %v790, 7
    %v792 = vsub.s32 0, %v791
    %v793 = vrot.slane %v788, %v792
    %v796 = vsel %vm61, %v776, 0
    %v799 = vsel %vm61, %v781, 0
    %801 = vmatprep.subr.mxu0 0.0
    %802 = vmatpush1.msra.mxu0 0.0
    %803 = vmatprep.subr.mxu0 0.0
    %804 = vmatpush1.msra.mxu0 0.0
    %805 = vmatprep.subr.mxu0 0.0
    %806 = vmatpush1.msra.mxu0 0.0
    %807 = vmatprep.subr.mxu0 0.0
    %808 = vmatpush1.msra.mxu0 0.0
    %809 = vmatprep.subr.mxu0 0.0
    %810 = vmatpush1.msra.mxu0 0.0
    %811 = vmatprep.subr.mxu0 0.0
    %812 = vmatpush1.msra.mxu0 0.0
    %813 = vmatprep.subr.mxu0 0.0
    %814 = vmatpush1.msra.mxu0 0.0
    %815 = vmatprep.subr.mxu0 0.0
    %816 = vmatpush1.msra.mxu0 0.0
    %817 = vmatprep.subr.mxu0 0.0
    %818 = vmatpush1.msra.mxu0 0.0
    %819 = vmatprep.subr.mxu0 0.0
    %820 = vmatpush1.msra.mxu0 0.0
    %821 = vmatprep.subr.mxu0 0.0
    %822 = vmatpush1.msra.mxu0 0.0
    %823 = vmatprep.subr.mxu0 0.0
    %824 = vmatpush1.msra.mxu0 0.0
    %825 = vmatprep.subr.mxu0 0.0
    %826 = vmatpush1.msra.mxu0 %v787
    %827 = vmatprep.subr.mxu0 0.0
    %828 = vmatpush1.msra.mxu0 %v786
    %829 = vmatprep.subr.mxu0 0.0
    %830 = vmatpush1.msra.mxu0 %v785
    %831 = vmatprep.subr.mxu0 0.0
    %832 = vmatpush1.msra.mxu0 %v784
    %833 = vmatprep.subr.mxu0 0.0
    %834 = vmatpush2.msra.mxu0 0.0
    %835 = vmatprep.subr.mxu0 0.0
    %836 = vmatpush2.msra.mxu0 0.0
    %837 = vmatprep.subr.mxu0 0.0
    %838 = vmatpush2.msra.mxu0 0.0
    %839 = vmatprep.subr.mxu0 0.0
    %840 = vmatpush2.msra.mxu0 0.0
    %841 = vmatprep.subr.mxu0 0.0
    %842 = vmatpush2.msra.mxu0 0.0
    %843 = vmatprep.subr.mxu0 0.0
    %844 = vmatpush2.msra.mxu0 0.0
    %845 = vmatprep.subr.mxu0 0.0
    %846 = vmatpush2.msra.mxu0 0.0
    %847 = vmatprep.subr.mxu0 0.0
    %848 = vmatpush2.msra.mxu0 0.0
    %849 = vmatprep.subr.mxu0 0.0
    %850 = vmatpush2.msra.mxu0 0.0
    %851 = vmatprep.subr.mxu0 0.0
    %852 = vmatpush2.msra.mxu0 0.0
    %853 = vmatprep.subr.mxu0 0.0
    %854 = vmatpush2.msra.mxu0 0.0
    %855 = vmatprep.subr.mxu0 0.0
    %856 = vmatpush2.msra.mxu0 0.0
    %857 = vmatprep.subr.mxu0 0.0
    %858 = vmatpush2.msra.mxu0 0.0
    %859 = vmatprep.subr.mxu0 0.0
    %860 = vmatpush2.msra.mxu0 0.0
    %861 = vmatprep.subr.mxu0 0.0
    %862 = vmatpush2.msra.mxu0 0.0
    %863 = vmatprep.subr.mxu0 0.0
    %864 = vmatpush2.msra.mxu0 0.0
    %865 = vmatprep.mubr.f32.mxu0 0.0
    %866 = vmatmul.mubr.f32.gmra.mxu0 %v796
    %v867 = vpop.f32.mrf.mxu0
    %v868 = vadd.f32 %v793, %v867
    %v869 = vpop.f32.mrf.mxu0
    %870 = vmatprep.mubr.f32.mxu0 0.0
    %871 = vmatmul.mubr.f32.gmra.mxu0 %v799
    %v872 = vpop.f32.mrf.mxu0
    %v873 = vadd.f32 %v793, %v872
    %v874 = vpop.f32.mrf.mxu0
    %875 = vdwg.mxu0
    %v876 = vadd.f32 %v57, %v868
    %v877 = vadd.f32 %v58, %v873
    %v878 = vld [vmem:[%s11] sm:$0x1]
    %v879 = vld [vmem:[%s12] sm:$0x1]
    %v880 = vsel %vm61, %v876, 0.0
    %881 = vadd.xlane.f32.xlu0 %v880
    %v882 = vpop.xlane.xlu0 %881
    %v883 = vsel %vm61, %v877, 0.0
    %884 = vadd.xlane.f32.xlu0 %v883
    %v885 = vpop.xlane.xlu0 %884
    %v886 = vmul.f32 %v882, %v68
    %v887 = vmul.f32 %v885, %v68
    %v888 = vsub.f32 %v876, %v886
    %v889 = vsub.f32 %v877, %v887
    %v890 = vmul.f32 %v888, %v888
    %v891 = vmul.f32 %v889, %v889
    %v892 = vsel %vm61, %v890, 0.0
    %893 = vadd.xlane.f32.xlu0 %v892
    %v894 = vpop.xlane.xlu0 %893
    %v895 = vsel %vm61, %v891, 0.0
    %896 = vadd.xlane.f32.xlu0 %v895
    %v897 = vpop.xlane.xlu0 %896
    %v898 = vmul.f32 %v894, 0.032258064
    %v899 = vmul.f32 %v897, 0.032258064
    %v900 = vrsqrt.pop %v898
    %v901 = vmul.f32 %v898, %v900
    %vm902 = vcmp.eq.f32.partialorder %v898, inf
    %v903 = vsel %vm902, %v898, %v901
    %vm904 = vcmp.eq.f32.partialorder %v898, 0.0
    %v905 = vand.u32 %v898, 2147483648
    %v906 = vsel %vm904, %v905, %v903
    %v907 = vrsqrt.pop %v899
    %v908 = vmul.f32 %v899, %v907
    %vm909 = vcmp.eq.f32.partialorder %v899, inf
    %v910 = vsel %vm909, %v899, %v908
    %vm911 = vcmp.eq.f32.partialorder %v899, 0.0
    %v912 = vand.u32 %v899, 2147483648
    %v913 = vsel %vm911, %v912, %v910
    %v914 = vadd.f32 %v906, 1e-06
    %v915 = vadd.f32 %v913, 1e-06
    %v916 = vrcp.pop %v914
    %v917 = vrcp.pop %v915
    %v919 = vlaneseq
    %v920 = vshrl.u32 %v919, 7
    %v921 = vsub.s32 0, %v920
    %v922 = vrot.slane %v878, %v921
    %v924 = vmul.f32 %v922, %v888
    %v925 = vmul.f32 %v922, %v889
    %v926 = vmul.f32 %v924, %v916
    %v927 = vmul.f32 %v925, %v917
    %v929 = vlaneseq
    %v930 = vshrl.u32 %v929, 7
    %v931 = vsub.s32 0, %v930
    %v932 = vrot.slane %v879, %v931
    %v934 = vadd.f32 %v926, %v932
    %v935 = vadd.f32 %v927, %v932
    %v936 = vld [vmem:[%s13] sm:$0xff]
    %v937 = vld [vmem:[%s13 + $0x8] sm:$0xff]
    %v938 = vld [vmem:[%s13 + $0x10] sm:$0xff]
    %v939 = vld [vmem:[%s13 + $0x18] sm:$0xff]
    %v940 = vld [vmem:[%s14] sm:$0x1]
    %v942 = vlaneseq
    %v943 = vshrl.u32 %v942, 7
    %v944 = vsub.s32 0, %v943
    %v945 = vrot.slane %v940, %v944
    %v948 = vsel %vm61, %v934, 0
    %v951 = vsel %vm61, %v935, 0
    %953 = vmatprep.subr.mxu0 0.0
    %954 = vmatpush1.msra.mxu0 0.0
    %955 = vmatprep.subr.mxu0 0.0
    %956 = vmatpush1.msra.mxu0 0.0
    %957 = vmatprep.subr.mxu0 0.0
    %958 = vmatpush1.msra.mxu0 0.0
    %959 = vmatprep.subr.mxu0 0.0
    %960 = vmatpush1.msra.mxu0 0.0
    %961 = vmatprep.subr.mxu0 0.0
    %962 = vmatpush1.msra.mxu0 0.0
    %963 = vmatprep.subr.mxu0 0.0
    %964 = vmatpush1.msra.mxu0 0.0
    %965 = vmatprep.subr.mxu0 0.0
    %966 = vmatpush1.msra.mxu0 0.0
    %967 = vmatprep.subr.mxu0 0.0
    %968 = vmatpush1.msra.mxu0 0.0
    %969 = vmatprep.subr.mxu0 0.0
    %970 = vmatpush1.msra.mxu0 0.0
    %971 = vmatprep.subr.mxu0 0.0
    %972 = vmatpush1.msra.mxu0 0.0
    %973 = vmatprep.subr.mxu0 0.0
    %974 = vmatpush1.msra.mxu0 0.0
    %975 = vmatprep.subr.mxu0 0.0
    %976 = vmatpush1.msra.mxu0 0.0
    %977 = vmatprep.subr.mxu0 0.0
    %978 = vmatpush1.msra.mxu0 %v939
    %979 = vmatprep.subr.mxu0 0.0
    %980 = vmatpush1.msra.mxu0 %v938
    %981 = vmatprep.subr.mxu0 0.0
    %982 = vmatpush1.msra.mxu0 %v937
    %983 = vmatprep.subr.mxu0 0.0
    %984 = vmatpush1.msra.mxu0 %v936
    %985 = vmatprep.subr.mxu0 0.0
    %986 = vmatpush2.msra.mxu0 0.0
    %987 = vmatprep.subr.mxu0 0.0
    %988 = vmatpush2.msra.mxu0 0.0
    %989 = vmatprep.subr.mxu0 0.0
    %990 = vmatpush2.msra.mxu0 0.0
    %991 = vmatprep.subr.mxu0 0.0
    %992 = vmatpush2.msra.mxu0 0.0
    %993 = vmatprep.subr.mxu0 0.0
    %994 = vmatpush2.msra.mxu0 0.0
    %995 = vmatprep.subr.mxu0 0.0
    %996 = vmatpush2.msra.mxu0 0.0
    %997 = vmatprep.subr.mxu0 0.0
    %998 = vmatpush2.msra.mxu0 0.0
    %999 = vmatprep.subr.mxu0 0.0
    %1000 = vmatpush2.msra.mxu0 0.0
    %1001 = vmatprep.subr.mxu0 0.0
    %1002 = vmatpush2.msra.mxu0 0.0
    %1003 = vmatprep.subr.mxu0 0.0
    %1004 = vmatpush2.msra.mxu0 0.0
    %1005 = vmatprep.subr.mxu0 0.0
    %1006 = vmatpush2.msra.mxu0 0.0
    %1007 = vmatprep.subr.mxu0 0.0
    %1008 = vmatpush2.msra.mxu0 0.0
    %1009 = vmatprep.subr.mxu0 0.0
    %1010 = vmatpush2.msra.mxu0 0.0
    %1011 = vmatprep.subr.mxu0 0.0
    %1012 = vmatpush2.msra.mxu0 0.0
    %1013 = vmatprep.subr.mxu0 0.0
    %1014 = vmatpush2.msra.mxu0 0.0
    %1015 = vmatprep.subr.mxu0 0.0
    %1016 = vmatpush2.msra.mxu0 0.0
    %1017 = vmatprep.mubr.f32.mxu0 0.0
    %1018 = vmatmul.mubr.f32.gmra.mxu0 %v948
    %v1019 = vpop.f32.mrf.mxu0
    %v1020 = vadd.f32 %v945, %v1019
    %v1021 = vpop.f32.mrf.mxu0
    %1022 = vmatprep.mubr.f32.mxu0 0.0
    %1023 = vmatmul.mubr.f32.gmra.mxu0 %v951
    %v1024 = vpop.f32.mrf.mxu0
    %v1025 = vadd.f32 %v945, %v1024
    %v1026 = vpop.f32.mrf.mxu0
    %1027 = vdwg.mxu0
    %v1028 = vmax.f32 %v1020, 0.0
    %v1029 = vmax.f32 %v1025, 0.0
    %v1030 = vld [vmem:[%s15] sm:$0xff]
    %v1031 = vld [vmem:[%s15 + $0x8] sm:$0xff]
    %v1032 = vld [vmem:[%s15 + $0x10] sm:$0xff]
    %v1033 = vld [vmem:[%s15 + $0x18] sm:$0xff]
    %v1034 = vld [vmem:[%s15 + $0x20] sm:$0xff]
    %v1035 = vld [vmem:[%s15 + $0x28] sm:$0xff]
    %v1036 = vld [vmem:[%s15 + $0x30] sm:$0xff]
    %v1037 = vld [vmem:[%s15 + $0x38] sm:$0xff]
    %v1038 = vld [vmem:[%s16] sm:$0x1]
    %v1040 = vlaneseq
    %v1041 = vshrl.u32 %v1040, 7
    %v1042 = vsub.s32 0, %v1041
    %v1043 = vrot.slane %v1038, %v1042
    %v1046 = vsel %vm597, %v1028, 0
    %v1049 = vsel %vm597, %v1029, 0
    %1051 = vmatprep.subr.mxu0 0.0
    %1052 = vmatpush1.msra.mxu0 0.0
    %1053 = vmatprep.subr.mxu0 0.0
    %1054 = vmatpush1.msra.mxu0 0.0
    %1055 = vmatprep.subr.mxu0 0.0
    %1056 = vmatpush1.msra.mxu0 0.0
    %1057 = vmatprep.subr.mxu0 0.0
    %1058 = vmatpush1.msra.mxu0 0.0
    %1059 = vmatprep.subr.mxu0 0.0
    %1060 = vmatpush1.msra.mxu0 0.0
    %1061 = vmatprep.subr.mxu0 0.0
    %1062 = vmatpush1.msra.mxu0 0.0
    %1063 = vmatprep.subr.mxu0 0.0
    %1064 = vmatpush1.msra.mxu0 0.0
    %1065 = vmatprep.subr.mxu0 0.0
    %1066 = vmatpush1.msra.mxu0 0.0
    %1067 = vmatprep.subr.mxu0 0.0
    %1068 = vmatpush1.msra.mxu0 %v1037
    %1069 = vmatprep.subr.mxu0 0.0
    %1070 = vmatpush1.msra.mxu0 %v1036
    %1071 = vmatprep.subr.mxu0 0.0
    %1072 = vmatpush1.msra.mxu0 %v1035
    %1073 = vmatprep.subr.mxu0 0.0
    %1074 = vmatpush1.msra.mxu0 %v1034
    %1075 = vmatprep.subr.mxu0 0.0
    %1076 = vmatpush1.msra.mxu0 %v1033
    %1077 = vmatprep.subr.mxu0 0.0
    %1078 = vmatpush1.msra.mxu0 %v1032
    %1079 = vmatprep.subr.mxu0 0.0
    %1080 = vmatpush1.msra.mxu0 %v1031
    %1081 = vmatprep.subr.mxu0 0.0
    %1082 = vmatpush1.msra.mxu0 %v1030
    %1083 = vmatprep.subr.mxu0 0.0
    %1084 = vmatpush2.msra.mxu0 0.0
    %1085 = vmatprep.subr.mxu0 0.0
    %1086 = vmatpush2.msra.mxu0 0.0
    %1087 = vmatprep.subr.mxu0 0.0
    %1088 = vmatpush2.msra.mxu0 0.0
    %1089 = vmatprep.subr.mxu0 0.0
    %1090 = vmatpush2.msra.mxu0 0.0
    %1091 = vmatprep.subr.mxu0 0.0
    %1092 = vmatpush2.msra.mxu0 0.0
    %1093 = vmatprep.subr.mxu0 0.0
    %1094 = vmatpush2.msra.mxu0 0.0
    %1095 = vmatprep.subr.mxu0 0.0
    %1096 = vmatpush2.msra.mxu0 0.0
    %1097 = vmatprep.subr.mxu0 0.0
    %1098 = vmatpush2.msra.mxu0 0.0
    %1099 = vmatprep.subr.mxu0 0.0
    %1100 = vmatpush2.msra.mxu0 0.0
    %1101 = vmatprep.subr.mxu0 0.0
    %1102 = vmatpush2.msra.mxu0 0.0
    %1103 = vmatprep.subr.mxu0 0.0
    %1104 = vmatpush2.msra.mxu0 0.0
    %1105 = vmatprep.subr.mxu0 0.0
    %1106 = vmatpush2.msra.mxu0 0.0
    %1107 = vmatprep.subr.mxu0 0.0
    %1108 = vmatpush2.msra.mxu0 0.0
    %1109 = vmatprep.subr.mxu0 0.0
    %1110 = vmatpush2.msra.mxu0 0.0
    %1111 = vmatprep.subr.mxu0 0.0
    %1112 = vmatpush2.msra.mxu0 0.0
    %1113 = vmatprep.subr.mxu0 0.0
    %1114 = vmatpush2.msra.mxu0 0.0
    %1115 = vmatprep.mubr.f32.mxu0 0.0
    %1116 = vmatmul.mubr.f32.gmra.mxu0 %v1046
    %v1117 = vpop.f32.mrf.mxu0
    %v1118 = vadd.f32 %v1043, %v1117
    %v1119 = vpop.f32.mrf.mxu0
    %1120 = vmatprep.mubr.f32.mxu0 0.0
    %1121 = vmatmul.mubr.f32.gmra.mxu0 %v1049
    %v1122 = vpop.f32.mrf.mxu0
    %v1123 = vadd.f32 %v1043, %v1122
    %v1124 = vpop.f32.mrf.mxu0
    %1125 = vdwg.mxu0
    %v1126 = vadd.f32 %v876, %v1118
    %v1127 = vadd.f32 %v877, %v1123
    %1128 = vst.msk [vmem:[#allocation2] sm:$0xff] %vm61, %v1126
    %1129 = vst.msk [vmem:[#allocation2 + $0x8] sm:$0xff] %vm61, %v1127
    // Predicated region
    $region70: #{tpu_custom_call.1} parent=1 // pred_check
      _
    $region71: #{tpu_custom_call.1} parent=1 // pred_check_branch
      %1131 = sbr.rel (0) target = $region73
    $region72: #{tpu_custom_call.1} parent=1 // pred_region
      %s1133 = ssub.s32 256, 256
      %1134 = vsyncadd [#allocation3], %s1133
      %s1135 = sshll.u32 [#allocation2], 4
      %s1136 = int_to_ptr.vmem [resolvable:$true] %s1135
      %1141 = dma.vmem_to_hbm [thread:$0]  %s1136, 256, %s17, [#allocation3], 128, 128, 8
    $region73: #{tpu_custom_call.1} parent=1 // pred_fallthru
      _
    // Predicated region
    $region74: #{tpu_custom_call.1} parent=1 // pred_check
      _
    $region75: #{tpu_custom_call.1} parent=1 // pred_check_branch
      %1143 = sbr.rel (0) target = $region77
    $region76: #{tpu_custom_call.1} parent=1 // pred_region
      %1144 = dma.done [#allocation3], 256
    $region77: #{tpu_custom_call.1} parent=1 // pred_fallthru
      _
    %1145 = vsyncpa [#allocation3], 1

</llo_original>
